<compile_context>
chip_gen: v6e
topology: v6e:2x2x1
jax: 0.10.0
libtpu: 0.0.40
codegen_flags: <defaults>
</compile_context>

<pallas_src>
import math

import jax
import jax.numpy as jnp
from jax.experimental import pallas as pl
from jax.experimental.pallas import tpu as pltpu  # noqa: F401  (TPU-specific params if scaled up)

# ---- model hyper-params (small, deterministic) ----
B = 2           # batch
S = 8           # seq len
D = 32          # d_model
H = 4           # num_heads
DK = D // H     # d_k
DFF = 64        # d_ff
EPS = 1e-5      # nn.LayerNorm default eps
VEC_W = 128     # lane width of the packed 1-D parameter slab (one vreg row)
WSLAB = 3 * D + D + DFF   # fused [Wqkv | Wo | W1] slab width = 192


def _layer_norm(y, gamma, beta):
    """LayerNorm over the last axis. gamma/beta are (1, D) rows."""
    mean = jnp.mean(y, axis=-1, keepdims=True)
    cent = y - mean
    var = jnp.mean(cent * cent, axis=-1, keepdims=True)
    inv = jax.lax.rsqrt(var + EPS)
    return cent * inv * gamma + beta


def encoder_layer_kernel(x_ref, bias_ref, wslab_ref, w2_ref, vec_ref, o_ref):
    # Whole problem is resident in VMEM; single invocation (no grid).
    x = x_ref[...]                          # (B*S, D)
    wslab = wslab_ref[...]                  # (D, 192) = [Wqkv | Wo | W1]
    vec = vec_ref[...]                      # (8, VEC_W) packed 1-D params

    wqkv = wslab[:, 0:3 * D]                # (D, 3D)   lanes 0:96
    wo   = wslab[:, 3 * D:4 * D]            # (D, D)    lanes 96:128
    w1   = wslab[:, 4 * D:4 * D + DFF]      # (D, DFF)  lanes 128:192

    bqkv = vec[0:1, :3 * D]                 # (1, 3D)
    bo   = vec[1:2, :D]                     # (1, D)
    g1   = vec[2:3, :D]
    be1  = vec[3:4, :D]
    b1   = vec[4:5, :DFF]                   # (1, DFF)
    b2   = vec[5:6, :D]
    g2   = vec[6:7, :D]
    be2  = vec[7:8, :D]

    # --- fused Q/K/V projection: one (B*S, D) @ (D, 3D) MXU push ---
    qkv = jnp.dot(x, wqkv, preferred_element_type=jnp.float32) + bqkv   # (B*S, 3D)

    def gather_heads(base):
        # (B*S, 3D) column block -> (B*H, S, DK), heads folded under the batch dim
        # (b-major), using only lane slices + leading-dim stack/reshape.
        cols = [qkv[:, base + h * DK: base + (h + 1) * DK].reshape(B, S, DK)
                for h in range(H)]
        return jnp.stack(cols, axis=1).reshape(B * H, S, DK)

    q_bh = gather_heads(0)
    k_bh = gather_heads(D)
    v_bh = gather_heads(2 * D)

    # --- attention, fully batched over (B*H): one scores einsum, one softmax chain ---
    scale = 1.0 / math.sqrt(DK)
    s = jnp.einsum("bqd,bkd->bqk", q_bh, k_bh,
                   preferred_element_type=jnp.float32) * scale + bias_ref[...]  # (B*H, S, S)
    m = jnp.max(s, axis=-1, keepdims=True)
    e = jnp.exp(s - m)
    denom = jnp.sum(e, axis=-1, keepdims=True)
    # approx=False: keeps the 1e-4 fidelity guarantee; 64 reciprocals are noise here.
    p = e * pl.reciprocal(denom, approx=False)                                   # (B*H, S, S)
    ctx_bh = jnp.einsum("bqk,bkd->bqd", p, v_bh,
                        preferred_element_type=jnp.float32)                      # (B*H, S, DK)

    # reassemble heads along the lane axis -> single output-projection matmul
    ctx4 = ctx_bh.reshape(B, H, S, DK)
    ctx = jnp.concatenate([ctx4[:, h] for h in range(H)], axis=-1)               # (B, S, D)
    ctx = ctx.reshape(B * S, D)
    attn_out = jnp.dot(ctx, wo, preferred_element_type=jnp.float32) + bo

    # residual + layernorm 1 (dropout1 = identity in eval mode)
    x1 = _layer_norm(x + attn_out, g1, be1)

    # --- position-wise feed-forward (dropout inside FFN = identity) ---
    hdn = jnp.maximum(jnp.dot(x1, w1, preferred_element_type=jnp.float32) + b1, 0.0)
    ff = jnp.dot(hdn, w2_ref[...], preferred_element_type=jnp.float32) + b2

    # residual + layernorm 2 (dropout2 = identity)
    o_ref[...] = _layer_norm(x1 + ff, g2, be2).astype(o_ref.dtype)


def pack_params(params):
    """One-time host-side packing (amortized over the model's lifetime):
    fuse [Wq|Wk|Wv|Wo|W1] into one (D, 192) slab and pack all 1-D params into a
    single (8, 128) f32 slab."""
    (wq, bq, wk, bk, wv, bv, wo, bo,
     g1, be1, w1, b1, w2, b2, g2, be2) = params
    wslab = jnp.concatenate([wq, wk, wv, wo, w1], axis=1)   # (D, 3D + D + DFF)
    bqkv = jnp.concatenate([bq, bk, bv], axis=0)            # (3D,)

    def row(v):
        return jnp.pad(v, (0, VEC_W - v.shape[0]))

    vec_pack = jnp.stack(
        [row(bqkv), row(bo), row(g1), row(be1),
         row(b1), row(b2), row(g2), row(be2)], axis=0)      # (8, 128)
    return wslab, w2, vec_pack


@jax.jit
def encoder_layer(x, mask, wslab, w2, vec_pack):
    x_flat = x.reshape(B * S, D)
    # additive attention bias, precomputed outside the kernel (review item):
    # -1e9 at masked positions, 0 elsewhere; heads folded under the batch dim.
    bias = jnp.where(mask == 0, -1e9, 0.0).astype(jnp.float32).reshape(B * H, S, S)
    out_flat = pl.pallas_call(
        encoder_layer_kernel,
        out_shape=jax.ShapeDtypeStruct((B * S, D), jnp.float32),
        # no grid: single invocation; every block is the full array (so the
        # (8,128) divisibility rule is satisfied by the "full-dims" exemption)
        in_specs=[
            pl.BlockSpec((B * S, D), lambda: (0, 0)),          # x (flattened batch*seq)
            pl.BlockSpec((B * H, S, S), lambda: (0, 0, 0)),    # additive mask bias
            pl.BlockSpec((D, WSLAB), lambda: (0, 0)),          # fused [Wqkv|Wo|W1]
            pl.BlockSpec((DFF, D), lambda: (0, 0)),            # W2
            pl.BlockSpec((8, VEC_W), lambda: (0, 0)),          # packed 1-D params
        ],
        out_specs=pl.BlockSpec((B * S, D), lambda: (0, 0)),
    )(x_flat, bias, wslab, w2, vec_pack)
    return out_flat.reshape(B, S, D)


def reference(x, mask, params):
    """Pure-JAX reference mirroring the PyTorch forward (eval mode) exactly."""
    (wq, bq, wk, bk, wv, bv, wo, bo,
     g1, be1, w1, b1, w2, b2, g2, be2) = params

    def ln(y, g, b):
        mu = jnp.mean(y, axis=-1, keepdims=True)
        var = jnp.mean((y - mu) ** 2, axis=-1, keepdims=True)
        return (y - mu) / jnp.sqrt(var + EPS) * g + b

    q = (x @ wq + bq).reshape(B, S, H, DK).transpose(0, 2, 1, 3)
    k = (x @ wk + bk).reshape(B, S, H, DK).transpose(0, 2, 1, 3)
    v = (x @ wv + bv).reshape(B, S, H, DK).transpose(0, 2, 1, 3)
    scores = jnp.einsum("bhqd,bhkd->bhqk", q, k) / math.sqrt(DK)
    scores = jnp.where(mask == 0, -1e9, scores)
    attn = jax.nn.softmax(scores, axis=-1)
    out = jnp.einsum("bhqk,bhkd->bhqd", attn, v).transpose(0, 2, 1, 3).reshape(B, S, D)
    out = out @ wo + bo
    x1 = ln(x + out, g1, be1)
    ff = jnp.maximum(x1 @ w1 + b1, 0.0) @ w2 + b2
    return ln(x1 + ff, g2, be2)


if __name__ == "__main__":
    key = jax.random.PRNGKey(0)
    keys = jax.random.split(key, 16)

    def lin(kw, fan_in, fan_out):
        w = jax.random.normal(kw, (fan_in, fan_out), jnp.float32) * (1.0 / math.sqrt(fan_in))
        b = jnp.zeros((fan_out,), jnp.float32)
        return w, b

    wq, bq = lin(keys[0], D, D)
    wk, bk = lin(keys[1], D, D)
    wv, bv = lin(keys[2], D, D)
    wo, bo = lin(keys[3], D, D)
    g1 = jnp.ones((D,), jnp.float32); be1 = jnp.zeros((D,), jnp.float32)
    w1, b1 = lin(keys[4], D, DFF)
    w2, b2 = lin(keys[5], DFF, D)
    g2 = jnp.ones((D,), jnp.float32); be2 = jnp.zeros((D,), jnp.float32)
    b1 = jax.random.normal(keys[6], (DFF,), jnp.float32) * 0.01
    b2 = jax.random.normal(keys[7], (D,), jnp.float32) * 0.01
    bq = jax.random.normal(keys[8], (D,), jnp.float32) * 0.01
    bo = jax.random.normal(keys[9], (D,), jnp.float32) * 0.01

    params = (wq, bq, wk, bk, wv, bv, wo, bo,
              g1, be1, w1, b1, w2, b2, g2, be2)

    x = jax.random.normal(keys[10], (B, S, D), jnp.float32)
    # mask: block the last key position for each query (nonzero = keep, 0 = masked)
    mask = jnp.ones((B, H, S, S), jnp.float32).at[..., -1].set(0.0)

    packed = pack_params(params)
    out = encoder_layer(x, mask, *packed)
    jax.block_until_ready(out)

    ref = reference(x, mask, params)
    assert jnp.allclose(out, ref, atol=1e-4, rtol=1e-4), "mismatch vs reference"

    print("KERNEL_OK")
</pallas_src>

<mosaic_0001>
module attributes {stable_mosaic.version = 11 : i64} {
  func.func @encoder_layer_kernel(%arg0: memref<16x32xf32, #tpu.memory_space<vmem>>, %arg1: memref<8x8x8xf32, #tpu.memory_space<vmem>>, %arg2: memref<32x192xf32, #tpu.memory_space<vmem>>, %arg3: memref<64x32xf32, #tpu.memory_space<vmem>>, %arg4: memref<8x128xf32, #tpu.memory_space<vmem>>, %arg5: memref<16x32xf32, #tpu.memory_space<vmem>>) attributes {dimension_semantics = [], scalar_prefetch = 0 : i64, scratch_operands = 0 : i64, tpu.core_type = #tpu.core_type<tc>} {
    %c0 = arith.constant 0 : index
    %c0_0 = arith.constant 0 : index
    %0 = vector.load %arg0[%c0, %c0_0] : memref<16x32xf32, #tpu.memory_space<vmem>>, vector<16x32xf32>
    %c0_1 = arith.constant 0 : index
    %c0_2 = arith.constant 0 : index
    %1 = vector.load %arg2[%c0_1, %c0_2] : memref<32x192xf32, #tpu.memory_space<vmem>>, vector<32x192xf32>
    %c0_3 = arith.constant 0 : index
    %c0_4 = arith.constant 0 : index
    %2 = vector.load %arg4[%c0_3, %c0_4] : memref<8x128xf32, #tpu.memory_space<vmem>>, vector<8x128xf32>
    %3 = vector.extract_strided_slice %1 {offsets = [0, 0], sizes = [32, 96], strides = [1, 1]} : vector<32x192xf32> to vector<32x96xf32>
    %4 = vector.extract_strided_slice %1 {offsets = [0, 96], sizes = [32, 32], strides = [1, 1]} : vector<32x192xf32> to vector<32x32xf32>
    %5 = vector.extract_strided_slice %1 {offsets = [0, 128], sizes = [32, 64], strides = [1, 1]} : vector<32x192xf32> to vector<32x64xf32>
    %6 = vector.extract_strided_slice %2 {offsets = [0, 0], sizes = [1, 96], strides = [1, 1]} : vector<8x128xf32> to vector<1x96xf32>
    %7 = vector.extract_strided_slice %2 {offsets = [1, 0], sizes = [1, 32], strides = [1, 1]} : vector<8x128xf32> to vector<1x32xf32>
    %8 = vector.extract_strided_slice %2 {offsets = [2, 0], sizes = [1, 32], strides = [1, 1]} : vector<8x128xf32> to vector<1x32xf32>
    %9 = vector.extract_strided_slice %2 {offsets = [3, 0], sizes = [1, 32], strides = [1, 1]} : vector<8x128xf32> to vector<1x32xf32>
    %10 = vector.extract_strided_slice %2 {offsets = [4, 0], sizes = [1, 64], strides = [1, 1]} : vector<8x128xf32> to vector<1x64xf32>
    %11 = vector.extract_strided_slice %2 {offsets = [5, 0], sizes = [1, 32], strides = [1, 1]} : vector<8x128xf32> to vector<1x32xf32>
    %12 = vector.extract_strided_slice %2 {offsets = [6, 0], sizes = [1, 32], strides = [1, 1]} : vector<8x128xf32> to vector<1x32xf32>
    %13 = vector.extract_strided_slice %2 {offsets = [7, 0], sizes = [1, 32], strides = [1, 1]} : vector<8x128xf32> to vector<1x32xf32>
    %cst = arith.constant dense<0.000000e+00> : vector<16x96xf32>
    %14 = tpu.matmul %0, %3, %cst {dimension_numbers = #tpu.dot_dimension_numbers<[1], [0], [0], [1], [0, 0, 1, 1], [], []>} : vector<16x32xf32>, vector<32x96xf32>, vector<16x96xf32> -> vector<16x96xf32>
    %15 = vector.broadcast %6 : vector<1x96xf32> to vector<16x96xf32>
    %16 = arith.addf %14, %15 : vector<16x96xf32>
    %17 = vector.extract_strided_slice %16 {offsets = [0, 0], sizes = [16, 8], strides = [1, 1]} : vector<16x96xf32> to vector<16x8xf32>
    %18 = vector.shape_cast %17 : vector<16x8xf32> to vector<2x8x8xf32>
    %19 = vector.extract_strided_slice %16 {offsets = [0, 8], sizes = [16, 8], strides = [1, 1]} : vector<16x96xf32> to vector<16x8xf32>
    %20 = vector.shape_cast %19 : vector<16x8xf32> to vector<2x8x8xf32>
    %21 = vector.extract_strided_slice %16 {offsets = [0, 16], sizes = [16, 8], strides = [1, 1]} : vector<16x96xf32> to vector<16x8xf32>
    %22 = vector.shape_cast %21 : vector<16x8xf32> to vector<2x8x8xf32>
    %23 = vector.extract_strided_slice %16 {offsets = [0, 24], sizes = [16, 8], strides = [1, 1]} : vector<16x96xf32> to vector<16x8xf32>
    %24 = vector.shape_cast %23 : vector<16x8xf32> to vector<2x8x8xf32>
    %25 = vector.shape_cast %18 : vector<2x8x8xf32> to vector<2x1x8x8xf32>
    %26 = vector.shape_cast %20 : vector<2x8x8xf32> to vector<2x1x8x8xf32>
    %27 = vector.shape_cast %22 : vector<2x8x8xf32> to vector<2x1x8x8xf32>
    %28 = vector.shape_cast %24 : vector<2x8x8xf32> to vector<2x1x8x8xf32>
    %29 = tpu.concatenate %25, %26, %27, %28 in 1 : vector<2x1x8x8xf32>, vector<2x1x8x8xf32>, vector<2x1x8x8xf32>, vector<2x1x8x8xf32> -> vector<2x4x8x8xf32>
    %30 = vector.shape_cast %29 : vector<2x4x8x8xf32> to vector<8x8x8xf32>
    %31 = vector.extract_strided_slice %16 {offsets = [0, 32], sizes = [16, 8], strides = [1, 1]} : vector<16x96xf32> to vector<16x8xf32>
    %32 = vector.shape_cast %31 : vector<16x8xf32> to vector<2x8x8xf32>
    %33 = vector.extract_strided_slice %16 {offsets = [0, 40], sizes = [16, 8], strides = [1, 1]} : vector<16x96xf32> to vector<16x8xf32>
    %34 = vector.shape_cast %33 : vector<16x8xf32> to vector<2x8x8xf32>
    %35 = vector.extract_strided_slice %16 {offsets = [0, 48], sizes = [16, 8], strides = [1, 1]} : vector<16x96xf32> to vector<16x8xf32>
    %36 = vector.shape_cast %35 : vector<16x8xf32> to vector<2x8x8xf32>
    %37 = vector.extract_strided_slice %16 {offsets = [0, 56], sizes = [16, 8], strides = [1, 1]} : vector<16x96xf32> to vector<16x8xf32>
    %38 = vector.shape_cast %37 : vector<16x8xf32> to vector<2x8x8xf32>
    %39 = vector.shape_cast %32 : vector<2x8x8xf32> to vector<2x1x8x8xf32>
    %40 = vector.shape_cast %34 : vector<2x8x8xf32> to vector<2x1x8x8xf32>
    %41 = vector.shape_cast %36 : vector<2x8x8xf32> to vector<2x1x8x8xf32>
    %42 = vector.shape_cast %38 : vector<2x8x8xf32> to vector<2x1x8x8xf32>
    %43 = tpu.concatenate %39, %40, %41, %42 in 1 : vector<2x1x8x8xf32>, vector<2x1x8x8xf32>, vector<2x1x8x8xf32>, vector<2x1x8x8xf32> -> vector<2x4x8x8xf32>
    %44 = vector.shape_cast %43 : vector<2x4x8x8xf32> to vector<8x8x8xf32>
    %45 = vector.extract_strided_slice %16 {offsets = [0, 64], sizes = [16, 8], strides = [1, 1]} : vector<16x96xf32> to vector<16x8xf32>
    %46 = vector.shape_cast %45 : vector<16x8xf32> to vector<2x8x8xf32>
    %47 = vector.extract_strided_slice %16 {offsets = [0, 72], sizes = [16, 8], strides = [1, 1]} : vector<16x96xf32> to vector<16x8xf32>
    %48 = vector.shape_cast %47 : vector<16x8xf32> to vector<2x8x8xf32>
    %49 = vector.extract_strided_slice %16 {offsets = [0, 80], sizes = [16, 8], strides = [1, 1]} : vector<16x96xf32> to vector<16x8xf32>
    %50 = vector.shape_cast %49 : vector<16x8xf32> to vector<2x8x8xf32>
    %51 = vector.extract_strided_slice %16 {offsets = [0, 88], sizes = [16, 8], strides = [1, 1]} : vector<16x96xf32> to vector<16x8xf32>
    %52 = vector.shape_cast %51 : vector<16x8xf32> to vector<2x8x8xf32>
    %53 = vector.shape_cast %46 : vector<2x8x8xf32> to vector<2x1x8x8xf32>
    %54 = vector.shape_cast %48 : vector<2x8x8xf32> to vector<2x1x8x8xf32>
    %55 = vector.shape_cast %50 : vector<2x8x8xf32> to vector<2x1x8x8xf32>
    %56 = vector.shape_cast %52 : vector<2x8x8xf32> to vector<2x1x8x8xf32>
    %57 = tpu.concatenate %53, %54, %55, %56 in 1 : vector<2x1x8x8xf32>, vector<2x1x8x8xf32>, vector<2x1x8x8xf32>, vector<2x1x8x8xf32> -> vector<2x4x8x8xf32>
    %58 = vector.shape_cast %57 : vector<2x4x8x8xf32> to vector<8x8x8xf32>
    "tpu.trace_start"() <{level = 10 : i32, message = "bqd,bkd->bqk"}> : () -> ()
    %cst_5 = arith.constant dense<0.000000e+00> : vector<8x8x8xf32>
    %59 = tpu.matmul %30, %44, %cst_5 {dimension_numbers = #tpu.dot_dimension_numbers<[2], [2], [1], [1], [0, 0, 0, 1, 1, 1], [0], [0]>} : vector<8x8x8xf32>, vector<8x8x8xf32>, vector<8x8x8xf32> -> vector<8x8x8xf32>
    "tpu.trace_stop"() : () -> ()
    %cst_6 = arith.constant 0.353553385 : f32
    %60 = vector.broadcast %cst_6 : f32 to vector<8x8x8xf32>
    %61 = arith.mulf %59, %60 : vector<8x8x8xf32>
    %c0_7 = arith.constant 0 : index
    %c0_8 = arith.constant 0 : index
    %c0_9 = arith.constant 0 : index
    %62 = vector.load %arg1[%c0_7, %c0_8, %c0_9] : memref<8x8x8xf32, #tpu.memory_space<vmem>>, vector<8x8x8xf32>
    %63 = arith.addf %61, %62 : vector<8x8x8xf32>
    %cst_10 = arith.constant dense<0xFF800000> : vector<8x8xf32>
    %64 = vector.multi_reduction <maximumf>, %63, %cst_10 [2] : vector<8x8x8xf32> to vector<8x8xf32>
    %65 = vector.shape_cast %64 : vector<8x8xf32> to vector<8x8x1xf32>
    %66 = vector.broadcast %65 : vector<8x8x1xf32> to vector<8x8x8xf32>
    %67 = arith.subf %63, %66 : vector<8x8x8xf32>
    %68 = math.exp %67 : vector<8x8x8xf32>
    %cst_11 = arith.constant dense<0.000000e+00> : vector<8x8xf32>
    %69 = vector.multi_reduction <add>, %68, %cst_11 [2] : vector<8x8x8xf32> to vector<8x8xf32>
    %70 = vector.shape_cast %69 : vector<8x8xf32> to vector<8x8x1xf32>
    %71 = tpu.reciprocal %70 : vector<8x8x1xf32> -> vector<8x8x1xf32>
    %72 = vector.broadcast %71 : vector<8x8x1xf32> to vector<8x8x8xf32>
    %73 = arith.mulf %68, %72 : vector<8x8x8xf32>
    "tpu.trace_start"() <{level = 10 : i32, message = "bqk,bkd->bqd"}> : () -> ()
    %cst_12 = arith.constant dense<0.000000e+00> : vector<8x8x8xf32>
    %74 = tpu.matmul %73, %58, %cst_12 {dimension_numbers = #tpu.dot_dimension_numbers<[2], [1], [1], [2], [0, 0, 0, 1, 1, 2], [0], [0]>} : vector<8x8x8xf32>, vector<8x8x8xf32>, vector<8x8x8xf32> -> vector<8x8x8xf32>
    "tpu.trace_stop"() : () -> ()
    %75 = vector.shape_cast %74 : vector<8x8x8xf32> to vector<2x4x8x8xf32>
    %76 = vector.extract_strided_slice %75 {offsets = [0, 0, 0, 0], sizes = [2, 1, 8, 8], strides = [1, 1, 1, 1]} : vector<2x4x8x8xf32> to vector<2x1x8x8xf32>
    %77 = vector.shape_cast %76 : vector<2x1x8x8xf32> to vector<2x8x8xf32>
    %78 = vector.extract_strided_slice %75 {offsets = [0, 1, 0, 0], sizes = [2, 1, 8, 8], strides = [1, 1, 1, 1]} : vector<2x4x8x8xf32> to vector<2x1x8x8xf32>
    %79 = vector.shape_cast %78 : vector<2x1x8x8xf32> to vector<2x8x8xf32>
    %80 = vector.extract_strided_slice %75 {offsets = [0, 2, 0, 0], sizes = [2, 1, 8, 8], strides = [1, 1, 1, 1]} : vector<2x4x8x8xf32> to vector<2x1x8x8xf32>
    %81 = vector.shape_cast %80 : vector<2x1x8x8xf32> to vector<2x8x8xf32>
    %82 = vector.extract_strided_slice %75 {offsets = [0, 3, 0, 0], sizes = [2, 1, 8, 8], strides = [1, 1, 1, 1]} : vector<2x4x8x8xf32> to vector<2x1x8x8xf32>
    %83 = vector.shape_cast %82 : vector<2x1x8x8xf32> to vector<2x8x8xf32>
    %84 = tpu.concatenate %77, %79, %81, %83 in 2 : vector<2x8x8xf32>, vector<2x8x8xf32>, vector<2x8x8xf32>, vector<2x8x8xf32> -> vector<2x8x32xf32>
    %85 = vector.shape_cast %84 : vector<2x8x32xf32> to vector<16x32xf32>
    %cst_13 = arith.constant dense<0.000000e+00> : vector<16x32xf32>
    %86 = tpu.matmul %85, %4, %cst_13 {dimension_numbers = #tpu.dot_dimension_numbers<[1], [0], [0], [1], [0, 0, 1, 1], [], []>} : vector<16x32xf32>, vector<32x32xf32>, vector<16x32xf32> -> vector<16x32xf32>
    %87 = vector.broadcast %7 : vector<1x32xf32> to vector<16x32xf32>
    %88 = arith.addf %86, %87 : vector<16x32xf32>
    %89 = arith.addf %0, %88 : vector<16x32xf32>
    %cst_14 = arith.constant dense<0.000000e+00> : vector<16xf32>
    %90 = vector.multi_reduction <add>, %89, %cst_14 [1] : vector<16x32xf32> to vector<16xf32>
    %91 = vector.shape_cast %90 : vector<16xf32> to vector<16x1xf32>
    %cst_15 = arith.constant 3.200000e+01 : f32
    %92 = vector.broadcast %cst_15 : f32 to vector<16x1xf32>
    %93 = arith.divf %91, %92 : vector<16x1xf32>
    %94 = vector.broadcast %93 : vector<16x1xf32> to vector<16x32xf32>
    %95 = arith.subf %89, %94 : vector<16x32xf32>
    %96 = arith.mulf %95, %95 : vector<16x32xf32>
    %cst_16 = arith.constant dense<0.000000e+00> : vector<16xf32>
    %97 = vector.multi_reduction <add>, %96, %cst_16 [1] : vector<16x32xf32> to vector<16xf32>
    %98 = vector.shape_cast %97 : vector<16xf32> to vector<16x1xf32>
    %cst_17 = arith.constant 3.200000e+01 : f32
    %99 = vector.broadcast %cst_17 : f32 to vector<16x1xf32>
    %100 = arith.divf %98, %99 : vector<16x1xf32>
    %cst_18 = arith.constant 9.99999974E-6 : f32
    %101 = vector.broadcast %cst_18 : f32 to vector<16x1xf32>
    %102 = arith.addf %100, %101 : vector<16x1xf32>
    %103 = math.rsqrt %102 : vector<16x1xf32>
    %104 = vector.broadcast %103 : vector<16x1xf32> to vector<16x32xf32>
    %105 = arith.mulf %95, %104 : vector<16x32xf32>
    %106 = vector.broadcast %8 : vector<1x32xf32> to vector<16x32xf32>
    %107 = arith.mulf %105, %106 : vector<16x32xf32>
    %108 = vector.broadcast %9 : vector<1x32xf32> to vector<16x32xf32>
    %109 = arith.addf %107, %108 : vector<16x32xf32>
    %cst_19 = arith.constant dense<0.000000e+00> : vector<16x64xf32>
    %110 = tpu.matmul %109, %5, %cst_19 {dimension_numbers = #tpu.dot_dimension_numbers<[1], [0], [0], [1], [0, 0, 1, 1], [], []>} : vector<16x32xf32>, vector<32x64xf32>, vector<16x64xf32> -> vector<16x64xf32>
    %111 = vector.broadcast %10 : vector<1x64xf32> to vector<16x64xf32>
    %112 = arith.addf %110, %111 : vector<16x64xf32>
    %cst_20 = arith.constant 0.000000e+00 : f32
    %113 = vector.broadcast %cst_20 : f32 to vector<16x64xf32>
    %114 = arith.maximumf %112, %113 : vector<16x64xf32>
    %c0_21 = arith.constant 0 : index
    %c0_22 = arith.constant 0 : index
    %115 = vector.load %arg3[%c0_21, %c0_22] : memref<64x32xf32, #tpu.memory_space<vmem>>, vector<64x32xf32>
    %cst_23 = arith.constant dense<0.000000e+00> : vector<16x32xf32>
    %116 = tpu.matmul %114, %115, %cst_23 {dimension_numbers = #tpu.dot_dimension_numbers<[1], [0], [0], [1], [0, 0, 1, 1], [], []>} : vector<16x64xf32>, vector<64x32xf32>, vector<16x32xf32> -> vector<16x32xf32>
    %117 = vector.broadcast %11 : vector<1x32xf32> to vector<16x32xf32>
    %118 = arith.addf %116, %117 : vector<16x32xf32>
    %119 = arith.addf %109, %118 : vector<16x32xf32>
    %cst_24 = arith.constant dense<0.000000e+00> : vector<16xf32>
    %120 = vector.multi_reduction <add>, %119, %cst_24 [1] : vector<16x32xf32> to vector<16xf32>
    %121 = vector.shape_cast %120 : vector<16xf32> to vector<16x1xf32>
    %cst_25 = arith.constant 3.200000e+01 : f32
    %122 = vector.broadcast %cst_25 : f32 to vector<16x1xf32>
    %123 = arith.divf %121, %122 : vector<16x1xf32>
    %124 = vector.broadcast %123 : vector<16x1xf32> to vector<16x32xf32>
    %125 = arith.subf %119, %124 : vector<16x32xf32>
    %126 = arith.mulf %125, %125 : vector<16x32xf32>
    %cst_26 = arith.constant dense<0.000000e+00> : vector<16xf32>
    %127 = vector.multi_reduction <add>, %126, %cst_26 [1] : vector<16x32xf32> to vector<16xf32>
    %128 = vector.shape_cast %127 : vector<16xf32> to vector<16x1xf32>
    %cst_27 = arith.constant 3.200000e+01 : f32
    %129 = vector.broadcast %cst_27 : f32 to vector<16x1xf32>
    %130 = arith.divf %128, %129 : vector<16x1xf32>
    %cst_28 = arith.constant 9.99999974E-6 : f32
    %131 = vector.broadcast %cst_28 : f32 to vector<16x1xf32>
    %132 = arith.addf %130, %131 : vector<16x1xf32>
    %133 = math.rsqrt %132 : vector<16x1xf32>
    %134 = vector.broadcast %133 : vector<16x1xf32> to vector<16x32xf32>
    %135 = arith.mulf %125, %134 : vector<16x32xf32>
    %136 = vector.broadcast %12 : vector<1x32xf32> to vector<16x32xf32>
    %137 = arith.mulf %135, %136 : vector<16x32xf32>
    %138 = vector.broadcast %13 : vector<1x32xf32> to vector<16x32xf32>
    %139 = arith.addf %137, %138 : vector<16x32xf32>
    %c0_29 = arith.constant 0 : index
    %c0_30 = arith.constant 0 : index
    %140 = vector.load %arg5[%c0_29, %c0_30] : memref<16x32xf32, #tpu.memory_space<vmem>>, vector<16x32xf32>
    tpu.vector_store %arg5[%c0_29, %c0_30], %139 {strides = array<i32>} : memref<16x32xf32, #tpu.memory_space<vmem>>, vector<16x32xf32>,
    return
  }
}

</mosaic_0001>

<llo_original>
// kernel: encoder_layer.1
$region0: #{encoder_layer.1}
  #allocation0 [shape = 'u32[]', space=smem, size = 0x4, offset = 0x4, fixed_abs, tag = 'smem constant byte address 0x4 - core index']
  #allocation1 [shape = 'u32[144,128]{1,0:T(1,128)}', space=vmem, size = 0x12000, scoped, tag = 'internal scratch']
  %s0 = inlined_call_operand.vmem [shape: f32[16,32], index: 0, kind: input, shape index: {}]
  %s1 = inlined_call_operand.vmem [shape: f32[8,8,8], index: 1, kind: input, shape index: {}]
  %s2 = inlined_call_operand.vmem [shape: f32[32,192], index: 2, kind: input, shape index: {}]
  %s3 = inlined_call_operand.vmem [shape: f32[64,32], index: 3, kind: input, shape index: {}]
  %s4 = inlined_call_operand.vmem [shape: f32[8,128], index: 4, kind: input, shape index: {}]
  %s5 = inlined_call_operand.hbm [shape: f32[16,32], index: 5, kind: output, shape index: {}]
  %s6 = sld [smem:[#allocation0]]
  $region30: #{encoder_layer.1} parent=0
    _
  %s8 = ssub.s32 1, %s6
  %s9 = scalar_select 0, %s8, %s6
  $region1: #{encoder_layer.1} parent=0
    #allocation2 [shape = 'u8[8192]{0}', space=vmem, size = 0x2000, scoped, tag = 'output window, operand 0, single buffered']
    #allocation3 [shape = 's32[1]{0}', space=sflag, size = 0x4, scoped, tag = 'scoped memory for encoder_layer.1']
    %10 = vsyncpa [#allocation3], 0
    // Predicated region
    $region2: #{encoder_layer.1} parent=1 // pred_check
      _
    $region3: #{encoder_layer.1} parent=1 // pred_check_branch
      %12 = sbr.rel (0) target = $region5
    $region4: #{encoder_layer.1} parent=1 // pred_region
      _
    $region5: #{encoder_layer.1} parent=1 // pred_fallthru
      _
    // Predicated region
    $region6: #{encoder_layer.1} parent=1 // pred_check
      _
    $region7: #{encoder_layer.1} parent=1 // pred_check_branch
      %14 = sbr.rel (0) target = $region9
    $region8: #{encoder_layer.1} parent=1 // pred_region
      _
    $region9: #{encoder_layer.1} parent=1 // pred_fallthru
      _
    // Predicated region
    $region10: #{encoder_layer.1} parent=1 // pred_check
      _
    $region11: #{encoder_layer.1} parent=1 // pred_check_branch
      %16 = sbr.rel (0) target = $region13
    $region12: #{encoder_layer.1} parent=1 // pred_region
      _
    $region13: #{encoder_layer.1} parent=1 // pred_fallthru
      _
    // Predicated region
    $region14: #{encoder_layer.1} parent=1 // pred_check
      _
    $region15: #{encoder_layer.1} parent=1 // pred_check_branch
      %18 = sbr.rel (0) target = $region17
    $region16: #{encoder_layer.1} parent=1 // pred_region
      _
    $region17: #{encoder_layer.1} parent=1 // pred_fallthru
      _
    // Predicated region
    $region18: #{encoder_layer.1} parent=1 // pred_check
      _
    $region19: #{encoder_layer.1} parent=1 // pred_check_branch
      %20 = sbr.rel (0) target = $region21
    $region20: #{encoder_layer.1} parent=1 // pred_region
      _
    $region21: #{encoder_layer.1} parent=1 // pred_fallthru
      _
    %v21 = vld [vmem:[%s0] sm:$0xff]
    %v22 = vld [vmem:[%s0 + $0x8] sm:$0xff]
    %v23 = vld [vmem:[%s2] sm:$0xff]
    %v24 = vld [vmem:[%s2 + $0x8] sm:$0xff]
    %v25 = vld [vmem:[%s2 + $0x10] sm:$0xff]
    %v26 = vld [vmem:[%s2 + $0x18] sm:$0xff]
    %v27 = vld [vmem:[%s2 + $0x20] sm:$0xff]
    %v28 = vld [vmem:[%s2 + $0x28] sm:$0xff]
    %v29 = vld [vmem:[%s2 + $0x30] sm:$0xff]
    %v30 = vld [vmem:[%s2 + $0x38] sm:$0xff]
    %v31 = vld [vmem:[%s4] sm:$0xff]
    %v32 = vlaneseq
    %v33 = vshrl.u32 %v32, 7
    %v34 = vsub.s32 0, %v33
    %v35 = vrot.slane %v31, %v34
    %vm36 = vcmask 261120
    %v38 = vsel %vm36, %v21, 0
    %v41 = vsel %vm36, %v22, 0
    %43 = vmatprep.subr.mxu0 0.0
    %44 = vmatpush1.msra.mxu0 0.0
    %45 = vmatprep.subr.mxu0 0.0
    %46 = vmatpush1.msra.mxu0 0.0
    %47 = vmatprep.subr.mxu0 0.0
    %48 = vmatpush1.msra.mxu0 0.0
    %49 = vmatprep.subr.mxu0 0.0
    %50 = vmatpush1.msra.mxu0 0.0
    %51 = vmatprep.subr.mxu0 0.0
    %52 = vmatpush1.msra.mxu0 0.0
    %53 = vmatprep.subr.mxu0 0.0
    %54 = vmatpush1.msra.mxu0 0.0
    %55 = vmatprep.subr.mxu0 0.0
    %56 = vmatpush1.msra.mxu0 0.0
    %57 = vmatprep.subr.mxu0 0.0
    %58 = vmatpush1.msra.mxu0 0.0
    %59 = vmatprep.subr.mxu0 0.0
    %60 = vmatpush1.msra.mxu0 0.0
    %61 = vmatprep.subr.mxu0 0.0
    %62 = vmatpush1.msra.mxu0 0.0
    %63 = vmatprep.subr.mxu0 0.0
    %64 = vmatpush1.msra.mxu0 0.0
    %65 = vmatprep.subr.mxu0 0.0
    %66 = vmatpush1.msra.mxu0 0.0
    %67 = vmatprep.subr.mxu0 0.0
    %68 = vmatpush1.msra.mxu0 %v29
    %69 = vmatprep.subr.mxu0 0.0
    %70 = vmatpush1.msra.mxu0 %v27
    %71 = vmatprep.subr.mxu0 0.0
    %72 = vmatpush1.msra.mxu0 %v25
    %73 = vmatprep.subr.mxu0 0.0
    %74 = vmatpush1.msra.mxu0 %v23
    %75 = vmatprep.subr.mxu0 0.0
    %76 = vmatpush2.msra.mxu0 0.0
    %77 = vmatprep.subr.mxu0 0.0
    %78 = vmatpush2.msra.mxu0 0.0
    %79 = vmatprep.subr.mxu0 0.0
    %80 = vmatpush2.msra.mxu0 0.0
    %81 = vmatprep.subr.mxu0 0.0
    %82 = vmatpush2.msra.mxu0 0.0
    %83 = vmatprep.subr.mxu0 0.0
    %84 = vmatpush2.msra.mxu0 0.0
    %85 = vmatprep.subr.mxu0 0.0
    %86 = vmatpush2.msra.mxu0 0.0
    %87 = vmatprep.subr.mxu0 0.0
    %88 = vmatpush2.msra.mxu0 0.0
    %89 = vmatprep.subr.mxu0 0.0
    %90 = vmatpush2.msra.mxu0 0.0
    %91 = vmatprep.subr.mxu0 0.0
    %92 = vmatpush2.msra.mxu0 0.0
    %93 = vmatprep.subr.mxu0 0.0
    %94 = vmatpush2.msra.mxu0 0.0
    %95 = vmatprep.subr.mxu0 0.0
    %96 = vmatpush2.msra.mxu0 0.0
    %97 = vmatprep.subr.mxu0 0.0
    %98 = vmatpush2.msra.mxu0 0.0
    %99 = vmatprep.subr.mxu0 0.0
    %100 = vmatpush2.msra.mxu0 0.0
    %101 = vmatprep.subr.mxu0 0.0
    %102 = vmatpush2.msra.mxu0 0.0
    %103 = vmatprep.subr.mxu0 0.0
    %104 = vmatpush2.msra.mxu0 0.0
    %105 = vmatprep.subr.mxu0 0.0
    %106 = vmatpush2.msra.mxu0 0.0
    %107 = vmatprep.mubr.f32.mxu0 0.0
    %108 = vmatmul.mubr.f32.gmra.mxu0 %v38
    %v109 = vpop.f32.mrf.mxu0
    %v110 = vadd.f32 %v35, %v109
    %v111 = vpop.f32.mrf.mxu0
    %112 = vmatprep.mubr.f32.mxu0 0.0
    %113 = vmatmul.mubr.f32.gmra.mxu0 %v41
    %v114 = vpop.f32.mrf.mxu0
    %v115 = vadd.f32 %v35, %v114
    %v116 = vpop.f32.mrf.mxu0
    %117 = vdwg.mxu0
    %120 = vrot.lane.b32.xlu0 %v110, 120
    %v121 = vpop.permute.xlu0 %120
    %122 = vrot.lane.b32.xlu0 %v115, 120
    %v123 = vpop.permute.xlu0 %122
    %124 = vrot.lane.b32.xlu0 %v110, 112
    %v125 = vpop.permute.xlu0 %124
    %126 = vrot.lane.b32.xlu0 %v115, 112
    %v127 = vpop.permute.xlu0 %126
    %128 = vrot.lane.b32.xlu0 %v110, 104
    %v129 = vpop.permute.xlu0 %128
    %130 = vrot.lane.b32.xlu0 %v115, 104
    %v131 = vpop.permute.xlu0 %130
    %132 = vrot.lane.b32.xlu0 %v110, 96
    %v133 = vpop.permute.xlu0 %132
    %vm134 = vcmask 64512
    %v135 = vsel %vm134, %v110, 0
    %v137 = vsel %vm134, %v133, 0
    %139 = vmatprep.subr.mxu0 0.0
    %140 = vmatpush1.xpose.msra.mxu0 0.0
    %141 = vmatprep.subr.mxu0 0.0
    %142 = vmatpush1.xpose.msra.mxu0 0.0
    %143 = vmatprep.subr.mxu0 0.0
    %144 = vmatpush1.xpose.msra.mxu0 0.0
    %145 = vmatprep.subr.mxu0 0.0
    %146 = vmatpush1.xpose.msra.mxu0 0.0
    %147 = vmatprep.subr.mxu0 0.0
    %148 = vmatpush1.xpose.msra.mxu0 0.0
    %149 = vmatprep.subr.mxu0 0.0
    %150 = vmatpush1.xpose.msra.mxu0 0.0
    %151 = vmatprep.subr.mxu0 0.0
    %152 = vmatpush1.xpose.msra.mxu0 0.0
    %153 = vmatprep.subr.mxu0 0.0
    %154 = vmatpush1.xpose.msra.mxu0 0.0
    %155 = vmatprep.subr.mxu0 0.0
    %156 = vmatpush1.xpose.msra.mxu0 0.0
    %157 = vmatprep.subr.mxu0 0.0
    %158 = vmatpush1.xpose.msra.mxu0 0.0
    %159 = vmatprep.subr.mxu0 0.0
    %160 = vmatpush1.xpose.msra.mxu0 0.0
    %161 = vmatprep.subr.mxu0 0.0
    %162 = vmatpush1.xpose.msra.mxu0 0.0
    %163 = vmatprep.subr.mxu0 0.0
    %164 = vmatpush1.xpose.msra.mxu0 0.0
    %165 = vmatprep.subr.mxu0 0.0
    %166 = vmatpush1.xpose.msra.mxu0 0.0
    %167 = vmatprep.subr.mxu0 0.0
    %168 = vmatpush1.xpose.msra.mxu0 0.0
    %169 = vmatprep.subr.mxu0 0.0
    %170 = vmatpush1.xpose.msra.mxu0 %v137
    %171 = vmatprep.subr.mxu0 0.0
    %172 = vmatpush2.xpose.msra.mxu0 0.0
    %173 = vmatprep.subr.mxu0 0.0
    %174 = vmatpush2.xpose.msra.mxu0 0.0
    %175 = vmatprep.subr.mxu0 0.0
    %176 = vmatpush2.xpose.msra.mxu0 0.0
    %177 = vmatprep.subr.mxu0 0.0
    %178 = vmatpush2.xpose.msra.mxu0 0.0
    %179 = vmatprep.subr.mxu0 0.0
    %180 = vmatpush2.xpose.msra.mxu0 0.0
    %181 = vmatprep.subr.mxu0 0.0
    %182 = vmatpush2.xpose.msra.mxu0 0.0
    %183 = vmatprep.subr.mxu0 0.0
    %184 = vmatpush2.xpose.msra.mxu0 0.0
    %185 = vmatprep.subr.mxu0 0.0
    %186 = vmatpush2.xpose.msra.mxu0 0.0
    %187 = vmatprep.subr.mxu0 0.0
    %188 = vmatpush2.xpose.msra.mxu0 0.0
    %189 = vmatprep.subr.mxu0 0.0
    %190 = vmatpush2.xpose.msra.mxu0 0.0
    %191 = vmatprep.subr.mxu0 0.0
    %192 = vmatpush2.xpose.msra.mxu0 0.0
    %193 = vmatprep.subr.mxu0 0.0
    %194 = vmatpush2.xpose.msra.mxu0 0.0
    %195 = vmatprep.subr.mxu0 0.0
    %196 = vmatpush2.xpose.msra.mxu0 0.0
    %197 = vmatprep.subr.mxu0 0.0
    %198 = vmatpush2.xpose.msra.mxu0 0.0
    %199 = vmatprep.subr.mxu0 0.0
    %200 = vmatpush2.xpose.msra.mxu0 0.0
    %201 = vmatprep.subr.mxu0 0.0
    %202 = vmatpush2.xpose.msra.mxu0 0.0
    %203 = vmatprep.mubr.f32.mxu0 0.0
    %204 = vmatmul.mubr.f32.gmra.mxu0 %v135
    %v205 = vpop.f32.mrf.mxu0
    %v206 = vadd.f32 0.0, %v205
    %v207 = vpop.f32.mrf.mxu0
    %208 = vdwg.mxu0
    %209 = vrot.lane.b32.xlu0 %v121, 96
    %v210 = vpop.permute.xlu0 %209
    %v211 = vsel %vm134, %v121, 0
    %v213 = vsel %vm134, %v210, 0
    %215 = vmatprep.subr.mxu0 0.0
    %216 = vmatpush1.xpose.msra.mxu0 0.0
    %217 = vmatprep.subr.mxu0 0.0
    %218 = vmatpush1.xpose.msra.mxu0 0.0
    %219 = vmatprep.subr.mxu0 0.0
    %220 = vmatpush1.xpose.msra.mxu0 0.0
    %221 = vmatprep.subr.mxu0 0.0
    %222 = vmatpush1.xpose.msra.mxu0 0.0
    %223 = vmatprep.subr.mxu0 0.0
    %224 = vmatpush1.xpose.msra.mxu0 0.0
    %225 = vmatprep.subr.mxu0 0.0
    %226 = vmatpush1.xpose.msra.mxu0 0.0
    %227 = vmatprep.subr.mxu0 0.0
    %228 = vmatpush1.xpose.msra.mxu0 0.0
    %229 = vmatprep.subr.mxu0 0.0
    %230 = vmatpush1.xpose.msra.mxu0 0.0
    %231 = vmatprep.subr.mxu0 0.0
    %232 = vmatpush1.xpose.msra.mxu0 0.0
    %233 = vmatprep.subr.mxu0 0.0
    %234 = vmatpush1.xpose.msra.mxu0 0.0
    %235 = vmatprep.subr.mxu0 0.0
    %236 = vmatpush1.xpose.msra.mxu0 0.0
    %237 = vmatprep.subr.mxu0 0.0
    %238 = vmatpush1.xpose.msra.mxu0 0.0
    %239 = vmatprep.subr.mxu0 0.0
    %240 = vmatpush1.xpose.msra.mxu0 0.0
    %241 = vmatprep.subr.mxu0 0.0
    %242 = vmatpush1.xpose.msra.mxu0 0.0
    %243 = vmatprep.subr.mxu0 0.0
    %244 = vmatpush1.xpose.msra.mxu0 0.0
    %245 = vmatprep.subr.mxu0 0.0
    %246 = vmatpush1.xpose.msra.mxu0 %v213
    %247 = vmatprep.subr.mxu0 0.0
    %248 = vmatpush2.xpose.msra.mxu0 0.0
    %249 = vmatprep.subr.mxu0 0.0
    %250 = vmatpush2.xpose.msra.mxu0 0.0
    %251 = vmatprep.subr.mxu0 0.0
    %252 = vmatpush2.xpose.msra.mxu0 0.0
    %253 = vmatprep.subr.mxu0 0.0
    %254 = vmatpush2.xpose.msra.mxu0 0.0
    %255 = vmatprep.subr.mxu0 0.0
    %256 = vmatpush2.xpose.msra.mxu0 0.0
    %257 = vmatprep.subr.mxu0 0.0
    %258 = vmatpush2.xpose.msra.mxu0 0.0
    %259 = vmatprep.subr.mxu0 0.0
    %260 = vmatpush2.xpose.msra.mxu0 0.0
    %261 = vmatprep.subr.mxu0 0.0
    %262 = vmatpush2.xpose.msra.mxu0 0.0
    %263 = vmatprep.subr.mxu0 0.0
    %264 = vmatpush2.xpose.msra.mxu0 0.0
    %265 = vmatprep.subr.mxu0 0.0
    %266 = vmatpush2.xpose.msra.mxu0 0.0
    %267 = vmatprep.subr.mxu0 0.0
    %268 = vmatpush2.xpose.msra.mxu0 0.0
    %269 = vmatprep.subr.mxu0 0.0
    %270 = vmatpush2.xpose.msra.mxu0 0.0
    %271 = vmatprep.subr.mxu0 0.0
    %272 = vmatpush2.xpose.msra.mxu0 0.0
    %273 = vmatprep.subr.mxu0 0.0
    %274 = vmatpush2.xpose.msra.mxu0 0.0
    %275 = vmatprep.subr.mxu0 0.0
    %276 = vmatpush2.xpose.msra.mxu0 0.0
    %277 = vmatprep.subr.mxu0 0.0
    %278 = vmatpush2.xpose.msra.mxu0 0.0
    %279 = vmatprep.mubr.f32.mxu0 0.0
    %280 = vmatmul.mubr.f32.gmra.mxu0 %v211
    %v281 = vpop.f32.mrf.mxu0
    %v282 = vadd.f32 0.0, %v281
    %v283 = vpop.f32.mrf.mxu0
    %284 = vdwg.mxu0
    %285 = vrot.lane.b32.xlu0 %v125, 96
    %v286 = vpop.permute.xlu0 %285
    %v287 = vsel %vm134, %v125, 0
    %v289 = vsel %vm134, %v286, 0
    %291 = vmatprep.subr.mxu0 0.0
    %292 = vmatpush1.xpose.msra.mxu0 0.0
    %293 = vmatprep.subr.mxu0 0.0
    %294 = vmatpush1.xpose.msra.mxu0 0.0
    %295 = vmatprep.subr.mxu0 0.0
    %296 = vmatpush1.xpose.msra.mxu0 0.0
    %297 = vmatprep.subr.mxu0 0.0
    %298 = vmatpush1.xpose.msra.mxu0 0.0
    %299 = vmatprep.subr.mxu0 0.0
    %300 = vmatpush1.xpose.msra.mxu0 0.0
    %301 = vmatprep.subr.mxu0 0.0
    %302 = vmatpush1.xpose.msra.mxu0 0.0
    %303 = vmatprep.subr.mxu0 0.0
    %304 = vmatpush1.xpose.msra.mxu0 0.0
    %305 = vmatprep.subr.mxu0 0.0
    %306 = vmatpush1.xpose.msra.mxu0 0.0
    %307 = vmatprep.subr.mxu0 0.0
    %308 = vmatpush1.xpose.msra.mxu0 0.0
    %309 = vmatprep.subr.mxu0 0.0
    %310 = vmatpush1.xpose.msra.mxu0 0.0
    %311 = vmatprep.subr.mxu0 0.0
    %312 = vmatpush1.xpose.msra.mxu0 0.0
    %313 = vmatprep.subr.mxu0 0.0
    %314 = vmatpush1.xpose.msra.mxu0 0.0
    %315 = vmatprep.subr.mxu0 0.0
    %316 = vmatpush1.xpose.msra.mxu0 0.0
    %317 = vmatprep.subr.mxu0 0.0
    %318 = vmatpush1.xpose.msra.mxu0 0.0
    %319 = vmatprep.subr.mxu0 0.0
    %320 = vmatpush1.xpose.msra.mxu0 0.0
    %321 = vmatprep.subr.mxu0 0.0
    %322 = vmatpush1.xpose.msra.mxu0 %v289
    %323 = vmatprep.subr.mxu0 0.0
    %324 = vmatpush2.xpose.msra.mxu0 0.0
    %325 = vmatprep.subr.mxu0 0.0
    %326 = vmatpush2.xpose.msra.mxu0 0.0
    %327 = vmatprep.subr.mxu0 0.0
    %328 = vmatpush2.xpose.msra.mxu0 0.0
    %329 = vmatprep.subr.mxu0 0.0
    %330 = vmatpush2.xpose.msra.mxu0 0.0
    %331 = vmatprep.subr.mxu0 0.0
    %332 = vmatpush2.xpose.msra.mxu0 0.0
    %333 = vmatprep.subr.mxu0 0.0
    %334 = vmatpush2.xpose.msra.mxu0 0.0
    %335 = vmatprep.subr.mxu0 0.0
    %336 = vmatpush2.xpose.msra.mxu0 0.0
    %337 = vmatprep.subr.mxu0 0.0
    %338 = vmatpush2.xpose.msra.mxu0 0.0
    %339 = vmatprep.subr.mxu0 0.0
    %340 = vmatpush2.xpose.msra.mxu0 0.0
    %341 = vmatprep.subr.mxu0 0.0
    %342 = vmatpush2.xpose.msra.mxu0 0.0
    %343 = vmatprep.subr.mxu0 0.0
    %344 = vmatpush2.xpose.msra.mxu0 0.0
    %345 = vmatprep.subr.mxu0 0.0
    %346 = vmatpush2.xpose.msra.mxu0 0.0
    %347 = vmatprep.subr.mxu0 0.0
    %348 = vmatpush2.xpose.msra.mxu0 0.0
    %349 = vmatprep.subr.mxu0 0.0
    %350 = vmatpush2.xpose.msra.mxu0 0.0
    %351 = vmatprep.subr.mxu0 0.0
    %352 = vmatpush2.xpose.msra.mxu0 0.0
    %353 = vmatprep.subr.mxu0 0.0
    %354 = vmatpush2.xpose.msra.mxu0 0.0
    %355 = vmatprep.mubr.f32.mxu0 0.0
    %356 = vmatmul.mubr.f32.gmra.mxu0 %v287
    %v357 = vpop.f32.mrf.mxu0
    %v358 = vadd.f32 0.0, %v357
    %v359 = vpop.f32.mrf.mxu0
    %360 = vdwg.mxu0
    %361 = vrot.lane.b32.xlu0 %v129, 96
    %v362 = vpop.permute.xlu0 %361
    %v363 = vsel %vm134, %v129, 0
    %v365 = vsel %vm134, %v362, 0
    %367 = vmatprep.subr.mxu0 0.0
    %368 = vmatpush1.xpose.msra.mxu0 0.0
    %369 = vmatprep.subr.mxu0 0.0
    %370 = vmatpush1.xpose.msra.mxu0 0.0
    %371 = vmatprep.subr.mxu0 0.0
    %372 = vmatpush1.xpose.msra.mxu0 0.0
    %373 = vmatprep.subr.mxu0 0.0
    %374 = vmatpush1.xpose.msra.mxu0 0.0
    %375 = vmatprep.subr.mxu0 0.0
    %376 = vmatpush1.xpose.msra.mxu0 0.0
    %377 = vmatprep.subr.mxu0 0.0
    %378 = vmatpush1.xpose.msra.mxu0 0.0
    %379 = vmatprep.subr.mxu0 0.0
    %380 = vmatpush1.xpose.msra.mxu0 0.0
    %381 = vmatprep.subr.mxu0 0.0
    %382 = vmatpush1.xpose.msra.mxu0 0.0
    %383 = vmatprep.subr.mxu0 0.0
    %384 = vmatpush1.xpose.msra.mxu0 0.0
    %385 = vmatprep.subr.mxu0 0.0
    %386 = vmatpush1.xpose.msra.mxu0 0.0
    %387 = vmatprep.subr.mxu0 0.0
    %388 = vmatpush1.xpose.msra.mxu0 0.0
    %389 = vmatprep.subr.mxu0 0.0
    %390 = vmatpush1.xpose.msra.mxu0 0.0
    %391 = vmatprep.subr.mxu0 0.0
    %392 = vmatpush1.xpose.msra.mxu0 0.0
    %393 = vmatprep.subr.mxu0 0.0
    %394 = vmatpush1.xpose.msra.mxu0 0.0
    %395 = vmatprep.subr.mxu0 0.0
    %396 = vmatpush1.xpose.msra.mxu0 0.0
    %397 = vmatprep.subr.mxu0 0.0
    %398 = vmatpush1.xpose.msra.mxu0 %v365
    %399 = vmatprep.subr.mxu0 0.0
    %400 = vmatpush2.xpose.msra.mxu0 0.0
    %401 = vmatprep.subr.mxu0 0.0
    %402 = vmatpush2.xpose.msra.mxu0 0.0
    %403 = vmatprep.subr.mxu0 0.0
    %404 = vmatpush2.xpose.msra.mxu0 0.0
    %405 = vmatprep.subr.mxu0 0.0
    %406 = vmatpush2.xpose.msra.mxu0 0.0
    %407 = vmatprep.subr.mxu0 0.0
    %408 = vmatpush2.xpose.msra.mxu0 0.0
    %409 = vmatprep.subr.mxu0 0.0
    %410 = vmatpush2.xpose.msra.mxu0 0.0
    %411 = vmatprep.subr.mxu0 0.0
    %412 = vmatpush2.xpose.msra.mxu0 0.0
    %413 = vmatprep.subr.mxu0 0.0
    %414 = vmatpush2.xpose.msra.mxu0 0.0
    %415 = vmatprep.subr.mxu0 0.0
    %416 = vmatpush2.xpose.msra.mxu0 0.0
    %417 = vmatprep.subr.mxu0 0.0
    %418 = vmatpush2.xpose.msra.mxu0 0.0
    %419 = vmatprep.subr.mxu0 0.0
    %420 = vmatpush2.xpose.msra.mxu0 0.0
    %421 = vmatprep.subr.mxu0 0.0
    %422 = vmatpush2.xpose.msra.mxu0 0.0
    %423 = vmatprep.subr.mxu0 0.0
    %424 = vmatpush2.xpose.msra.mxu0 0.0
    %425 = vmatprep.subr.mxu0 0.0
    %426 = vmatpush2.xpose.msra.mxu0 0.0
    %427 = vmatprep.subr.mxu0 0.0
    %428 = vmatpush2.xpose.msra.mxu0 0.0
    %429 = vmatprep.subr.mxu0 0.0
    %430 = vmatpush2.xpose.msra.mxu0 0.0
    %431 = vmatprep.mubr.f32.mxu0 0.0
    %432 = vmatmul.mubr.f32.gmra.mxu0 %v363
    %v433 = vpop.f32.mrf.mxu0
    %v434 = vadd.f32 0.0, %v433
    %v435 = vpop.f32.mrf.mxu0
    %436 = vdwg.mxu0
    %437 = vrot.lane.b32.xlu0 %v115, 96
    %v438 = vpop.permute.xlu0 %437
    %v439 = vsel %vm134, %v115, 0
    %v441 = vsel %vm134, %v438, 0
    %443 = vmatprep.subr.mxu0 0.0
    %444 = vmatpush1.xpose.msra.mxu0 0.0
    %445 = vmatprep.subr.mxu0 0.0
    %446 = vmatpush1.xpose.msra.mxu0 0.0
    %447 = vmatprep.subr.mxu0 0.0
    %448 = vmatpush1.xpose.msra.mxu0 0.0
    %449 = vmatprep.subr.mxu0 0.0
    %450 = vmatpush1.xpose.msra.mxu0 0.0
    %451 = vmatprep.subr.mxu0 0.0
    %452 = vmatpush1.xpose.msra.mxu0 0.0
    %453 = vmatprep.subr.mxu0 0.0
    %454 = vmatpush1.xpose.msra.mxu0 0.0
    %455 = vmatprep.subr.mxu0 0.0
    %456 = vmatpush1.xpose.msra.mxu0 0.0
    %457 = vmatprep.subr.mxu0 0.0
    %458 = vmatpush1.xpose.msra.mxu0 0.0
    %459 = vmatprep.subr.mxu0 0.0
    %460 = vmatpush1.xpose.msra.mxu0 0.0
    %461 = vmatprep.subr.mxu0 0.0
    %462 = vmatpush1.xpose.msra.mxu0 0.0
    %463 = vmatprep.subr.mxu0 0.0
    %464 = vmatpush1.xpose.msra.mxu0 0.0
    %465 = vmatprep.subr.mxu0 0.0
    %466 = vmatpush1.xpose.msra.mxu0 0.0
    %467 = vmatprep.subr.mxu0 0.0
    %468 = vmatpush1.xpose.msra.mxu0 0.0
    %469 = vmatprep.subr.mxu0 0.0
    %470 = vmatpush1.xpose.msra.mxu0 0.0
    %471 = vmatprep.subr.mxu0 0.0
    %472 = vmatpush1.xpose.msra.mxu0 0.0
    %473 = vmatprep.subr.mxu0 0.0
    %474 = vmatpush1.xpose.msra.mxu0 %v441
    %475 = vmatprep.subr.mxu0 0.0
    %476 = vmatpush2.xpose.msra.mxu0 0.0
    %477 = vmatprep.subr.mxu0 0.0
    %478 = vmatpush2.xpose.msra.mxu0 0.0
    %479 = vmatprep.subr.mxu0 0.0
    %480 = vmatpush2.xpose.msra.mxu0 0.0
    %481 = vmatprep.subr.mxu0 0.0
    %482 = vmatpush2.xpose.msra.mxu0 0.0
    %483 = vmatprep.subr.mxu0 0.0
    %484 = vmatpush2.xpose.msra.mxu0 0.0
    %485 = vmatprep.subr.mxu0 0.0
    %486 = vmatpush2.xpose.msra.mxu0 0.0
    %487 = vmatprep.subr.mxu0 0.0
    %488 = vmatpush2.xpose.msra.mxu0 0.0
    %489 = vmatprep.subr.mxu0 0.0
    %490 = vmatpush2.xpose.msra.mxu0 0.0
    %491 = vmatprep.subr.mxu0 0.0
    %492 = vmatpush2.xpose.msra.mxu0 0.0
    %493 = vmatprep.subr.mxu0 0.0
    %494 = vmatpush2.xpose.msra.mxu0 0.0
    %495 = vmatprep.subr.mxu0 0.0
    %496 = vmatpush2.xpose.msra.mxu0 0.0
    %497 = vmatprep.subr.mxu0 0.0
    %498 = vmatpush2.xpose.msra.mxu0 0.0
    %499 = vmatprep.subr.mxu0 0.0
    %500 = vmatpush2.xpose.msra.mxu0 0.0
    %501 = vmatprep.subr.mxu0 0.0
    %502 = vmatpush2.xpose.msra.mxu0 0.0
    %503 = vmatprep.subr.mxu0 0.0
    %504 = vmatpush2.xpose.msra.mxu0 0.0
    %505 = vmatprep.subr.mxu0 0.0
    %506 = vmatpush2.xpose.msra.mxu0 0.0
    %507 = vmatprep.mubr.f32.mxu0 0.0
    %508 = vmatmul.mubr.f32.gmra.mxu0 %v439
    %v509 = vpop.f32.mrf.mxu0
    %v510 = vadd.f32 0.0, %v509
    %v511 = vpop.f32.mrf.mxu0
    %512 = vdwg.mxu0
    %513 = vrot.lane.b32.xlu0 %v123, 96
    %v514 = vpop.permute.xlu0 %513
    %v515 = vsel %vm134, %v123, 0
    %v517 = vsel %vm134, %v514, 0
    %519 = vmatprep.subr.mxu0 0.0
    %520 = vmatpush1.xpose.msra.mxu0 0.0
    %521 = vmatprep.subr.mxu0 0.0
    %522 = vmatpush1.xpose.msra.mxu0 0.0
    %523 = vmatprep.subr.mxu0 0.0
    %524 = vmatpush1.xpose.msra.mxu0 0.0
    %525 = vmatprep.subr.mxu0 0.0
    %526 = vmatpush1.xpose.msra.mxu0 0.0
    %527 = vmatprep.subr.mxu0 0.0
    %528 = vmatpush1.xpose.msra.mxu0 0.0
    %529 = vmatprep.subr.mxu0 0.0
    %530 = vmatpush1.xpose.msra.mxu0 0.0
    %531 = vmatprep.subr.mxu0 0.0
    %532 = vmatpush1.xpose.msra.mxu0 0.0
    %533 = vmatprep.subr.mxu0 0.0
    %534 = vmatpush1.xpose.msra.mxu0 0.0
    %535 = vmatprep.subr.mxu0 0.0
    %536 = vmatpush1.xpose.msra.mxu0 0.0
    %537 = vmatprep.subr.mxu0 0.0
    %538 = vmatpush1.xpose.msra.mxu0 0.0
    %539 = vmatprep.subr.mxu0 0.0
    %540 = vmatpush1.xpose.msra.mxu0 0.0
    %541 = vmatprep.subr.mxu0 0.0
    %542 = vmatpush1.xpose.msra.mxu0 0.0
    %543 = vmatprep.subr.mxu0 0.0
    %544 = vmatpush1.xpose.msra.mxu0 0.0
    %545 = vmatprep.subr.mxu0 0.0
    %546 = vmatpush1.xpose.msra.mxu0 0.0
    %547 = vmatprep.subr.mxu0 0.0
    %548 = vmatpush1.xpose.msra.mxu0 0.0
    %549 = vmatprep.subr.mxu0 0.0
    %550 = vmatpush1.xpose.msra.mxu0 %v517
    %551 = vmatprep.subr.mxu0 0.0
    %552 = vmatpush2.xpose.msra.mxu0 0.0
    %553 = vmatprep.subr.mxu0 0.0
    %554 = vmatpush2.xpose.msra.mxu0 0.0
    %555 = vmatprep.subr.mxu0 0.0
    %556 = vmatpush2.xpose.msra.mxu0 0.0
    %557 = vmatprep.subr.mxu0 0.0
    %558 = vmatpush2.xpose.msra.mxu0 0.0
    %559 = vmatprep.subr.mxu0 0.0
    %560 = vmatpush2.xpose.msra.mxu0 0.0
    %561 = vmatprep.subr.mxu0 0.0
    %562 = vmatpush2.xpose.msra.mxu0 0.0
    %563 = vmatprep.subr.mxu0 0.0
    %564 = vmatpush2.xpose.msra.mxu0 0.0
    %565 = vmatprep.subr.mxu0 0.0
    %566 = vmatpush2.xpose.msra.mxu0 0.0
    %567 = vmatprep.subr.mxu0 0.0
    %568 = vmatpush2.xpose.msra.mxu0 0.0
    %569 = vmatprep.subr.mxu0 0.0
    %570 = vmatpush2.xpose.msra.mxu0 0.0
    %571 = vmatprep.subr.mxu0 0.0
    %572 = vmatpush2.xpose.msra.mxu0 0.0
    %573 = vmatprep.subr.mxu0 0.0
    %574 = vmatpush2.xpose.msra.mxu0 0.0
    %575 = vmatprep.subr.mxu0 0.0
    %576 = vmatpush2.xpose.msra.mxu0 0.0
    %577 = vmatprep.subr.mxu0 0.0
    %578 = vmatpush2.xpose.msra.mxu0 0.0
    %579 = vmatprep.subr.mxu0 0.0
    %580 = vmatpush2.xpose.msra.mxu0 0.0
    %581 = vmatprep.subr.mxu0 0.0
    %582 = vmatpush2.xpose.msra.mxu0 0.0
    %583 = vmatprep.mubr.f32.mxu0 0.0
    %584 = vmatmul.mubr.f32.gmra.mxu0 %v515
    %v585 = vpop.f32.mrf.mxu0
    %v586 = vadd.f32 0.0, %v585
    %v587 = vpop.f32.mrf.mxu0
    %588 = vdwg.mxu0
    %589 = vrot.lane.b32.xlu0 %v127, 96
    %v590 = vpop.permute.xlu0 %589
    %v591 = vsel %vm134, %v127, 0
    %v593 = vsel %vm134, %v590, 0
    %595 = vmatprep.subr.mxu0 0.0
    %596 = vmatpush1.xpose.msra.mxu0 0.0
    %597 = vmatprep.subr.mxu0 0.0
    %598 = vmatpush1.xpose.msra.mxu0 0.0
    %599 = vmatprep.subr.mxu0 0.0
    %600 = vmatpush1.xpose.msra.mxu0 0.0
    %601 = vmatprep.subr.mxu0 0.0
    %602 = vmatpush1.xpose.msra.mxu0 0.0
    %603 = vmatprep.subr.mxu0 0.0
    %604 = vmatpush1.xpose.msra.mxu0 0.0
    %605 = vmatprep.subr.mxu0 0.0
    %606 = vmatpush1.xpose.msra.mxu0 0.0
    %607 = vmatprep.subr.mxu0 0.0
    %608 = vmatpush1.xpose.msra.mxu0 0.0
    %609 = vmatprep.subr.mxu0 0.0
    %610 = vmatpush1.xpose.msra.mxu0 0.0
    %611 = vmatprep.subr.mxu0 0.0
    %612 = vmatpush1.xpose.msra.mxu0 0.0
    %613 = vmatprep.subr.mxu0 0.0
    %614 = vmatpush1.xpose.msra.mxu0 0.0
    %615 = vmatprep.subr.mxu0 0.0
    %616 = vmatpush1.xpose.msra.mxu0 0.0
    %617 = vmatprep.subr.mxu0 0.0
    %618 = vmatpush1.xpose.msra.mxu0 0.0
    %619 = vmatprep.subr.mxu0 0.0
    %620 = vmatpush1.xpose.msra.mxu0 0.0
    %621 = vmatprep.subr.mxu0 0.0
    %622 = vmatpush1.xpose.msra.mxu0 0.0
    %623 = vmatprep.subr.mxu0 0.0
    %624 = vmatpush1.xpose.msra.mxu0 0.0
    %625 = vmatprep.subr.mxu0 0.0
    %626 = vmatpush1.xpose.msra.mxu0 %v593
    %627 = vmatprep.subr.mxu0 0.0
    %628 = vmatpush2.xpose.msra.mxu0 0.0
    %629 = vmatprep.subr.mxu0 0.0
    %630 = vmatpush2.xpose.msra.mxu0 0.0
    %631 = vmatprep.subr.mxu0 0.0
    %632 = vmatpush2.xpose.msra.mxu0 0.0
    %633 = vmatprep.subr.mxu0 0.0
    %634 = vmatpush2.xpose.msra.mxu0 0.0
    %635 = vmatprep.subr.mxu0 0.0
    %636 = vmatpush2.xpose.msra.mxu0 0.0
    %637 = vmatprep.subr.mxu0 0.0
    %638 = vmatpush2.xpose.msra.mxu0 0.0
    %639 = vmatprep.subr.mxu0 0.0
    %640 = vmatpush2.xpose.msra.mxu0 0.0
    %641 = vmatprep.subr.mxu0 0.0
    %642 = vmatpush2.xpose.msra.mxu0 0.0
    %643 = vmatprep.subr.mxu0 0.0
    %644 = vmatpush2.xpose.msra.mxu0 0.0
    %645 = vmatprep.subr.mxu0 0.0
    %646 = vmatpush2.xpose.msra.mxu0 0.0
    %647 = vmatprep.subr.mxu0 0.0
    %648 = vmatpush2.xpose.msra.mxu0 0.0
    %649 = vmatprep.subr.mxu0 0.0
    %650 = vmatpush2.xpose.msra.mxu0 0.0
    %651 = vmatprep.subr.mxu0 0.0
    %652 = vmatpush2.xpose.msra.mxu0 0.0
    %653 = vmatprep.subr.mxu0 0.0
    %654 = vmatpush2.xpose.msra.mxu0 0.0
    %655 = vmatprep.subr.mxu0 0.0
    %656 = vmatpush2.xpose.msra.mxu0 0.0
    %657 = vmatprep.subr.mxu0 0.0
    %658 = vmatpush2.xpose.msra.mxu0 0.0
    %659 = vmatprep.mubr.f32.mxu0 0.0
    %660 = vmatmul.mubr.f32.gmra.mxu0 %v591
    %v661 = vpop.f32.mrf.mxu0
    %v662 = vadd.f32 0.0, %v661
    %v663 = vpop.f32.mrf.mxu0
    %664 = vdwg.mxu0
    %665 = vrot.lane.b32.xlu0 %v131, 96
    %v666 = vpop.permute.xlu0 %665
    %v667 = vsel %vm134, %v131, 0
    %v669 = vsel %vm134, %v666, 0
    %671 = vmatprep.subr.mxu0 0.0
    %672 = vmatpush1.xpose.msra.mxu0 0.0
    %673 = vmatprep.subr.mxu0 0.0
    %674 = vmatpush1.xpose.msra.mxu0 0.0
    %675 = vmatprep.subr.mxu0 0.0
    %676 = vmatpush1.xpose.msra.mxu0 0.0
    %677 = vmatprep.subr.mxu0 0.0
    %678 = vmatpush1.xpose.msra.mxu0 0.0
    %679 = vmatprep.subr.mxu0 0.0
    %680 = vmatpush1.xpose.msra.mxu0 0.0
    %681 = vmatprep.subr.mxu0 0.0
    %682 = vmatpush1.xpose.msra.mxu0 0.0
    %683 = vmatprep.subr.mxu0 0.0
    %684 = vmatpush1.xpose.msra.mxu0 0.0
    %685 = vmatprep.subr.mxu0 0.0
    %686 = vmatpush1.xpose.msra.mxu0 0.0
    %687 = vmatprep.subr.mxu0 0.0
    %688 = vmatpush1.xpose.msra.mxu0 0.0
    %689 = vmatprep.subr.mxu0 0.0
    %690 = vmatpush1.xpose.msra.mxu0 0.0
    %691 = vmatprep.subr.mxu0 0.0
    %692 = vmatpush1.xpose.msra.mxu0 0.0
    %693 = vmatprep.subr.mxu0 0.0
    %694 = vmatpush1.xpose.msra.mxu0 0.0
    %695 = vmatprep.subr.mxu0 0.0
    %696 = vmatpush1.xpose.msra.mxu0 0.0
    %697 = vmatprep.subr.mxu0 0.0
    %698 = vmatpush1.xpose.msra.mxu0 0.0
    %699 = vmatprep.subr.mxu0 0.0
    %700 = vmatpush1.xpose.msra.mxu0 0.0
    %701 = vmatprep.subr.mxu0 0.0
    %702 = vmatpush1.xpose.msra.mxu0 %v669
    %703 = vmatprep.subr.mxu0 0.0
    %704 = vmatpush2.xpose.msra.mxu0 0.0
    %705 = vmatprep.subr.mxu0 0.0
    %706 = vmatpush2.xpose.msra.mxu0 0.0
    %707 = vmatprep.subr.mxu0 0.0
    %708 = vmatpush2.xpose.msra.mxu0 0.0
    %709 = vmatprep.subr.mxu0 0.0
    %710 = vmatpush2.xpose.msra.mxu0 0.0
    %711 = vmatprep.subr.mxu0 0.0
    %712 = vmatpush2.xpose.msra.mxu0 0.0
    %713 = vmatprep.subr.mxu0 0.0
    %714 = vmatpush2.xpose.msra.mxu0 0.0
    %715 = vmatprep.subr.mxu0 0.0
    %716 = vmatpush2.xpose.msra.mxu0 0.0
    %717 = vmatprep.subr.mxu0 0.0
    %718 = vmatpush2.xpose.msra.mxu0 0.0
    %719 = vmatprep.subr.mxu0 0.0
    %720 = vmatpush2.xpose.msra.mxu0 0.0
    %721 = vmatprep.subr.mxu0 0.0
    %722 = vmatpush2.xpose.msra.mxu0 0.0
    %723 = vmatprep.subr.mxu0 0.0
    %724 = vmatpush2.xpose.msra.mxu0 0.0
    %725 = vmatprep.subr.mxu0 0.0
    %726 = vmatpush2.xpose.msra.mxu0 0.0
    %727 = vmatprep.subr.mxu0 0.0
    %728 = vmatpush2.xpose.msra.mxu0 0.0
    %729 = vmatprep.subr.mxu0 0.0
    %730 = vmatpush2.xpose.msra.mxu0 0.0
    %731 = vmatprep.subr.mxu0 0.0
    %732 = vmatpush2.xpose.msra.mxu0 0.0
    %733 = vmatprep.subr.mxu0 0.0
    %734 = vmatpush2.xpose.msra.mxu0 0.0
    %735 = vmatprep.mubr.f32.mxu0 0.0
    %736 = vmatmul.mubr.f32.gmra.mxu0 %v667
    %v737 = vpop.f32.mrf.mxu0
    %v738 = vadd.f32 0.0, %v737
    %v739 = vpop.f32.mrf.mxu0
    %740 = vdwg.mxu0
    %v741 = vmul.f32 %v206, 0.35355338
    %v742 = vmul.f32 %v282, 0.35355338
    %v743 = vmul.f32 %v358, 0.35355338
    %v744 = vmul.f32 %v434, 0.35355338
    %v745 = vmul.f32 %v510, 0.35355338
    %v746 = vmul.f32 %v586, 0.35355338
    %v747 = vmul.f32 %v662, 0.35355338
    %v748 = vmul.f32 %v738, 0.35355338
    %v749 = vld [vmem:[%s1] sm:$0xff]
    %v750 = vld [vmem:[%s1 + $0x8] sm:$0xff]
    %v751 = vld [vmem:[%s1 + $0x10] sm:$0xff]
    %v752 = vld [vmem:[%s1 + $0x18] sm:$0xff]
    %v753 = vld [vmem:[%s1 + $0x20] sm:$0xff]
    %v754 = vld [vmem:[%s1 + $0x28] sm:$0xff]
    %v755 = vld [vmem:[%s1 + $0x30] sm:$0xff]
    %v756 = vld [vmem:[%s1 + $0x38] sm:$0xff]
    %v757 = vadd.f32 %v741, %v749
    %v758 = vadd.f32 %v742, %v750
    %v759 = vadd.f32 %v743, %v751
    %v760 = vadd.f32 %v744, %v752
    %v761 = vadd.f32 %v745, %v753
    %v762 = vadd.f32 %v746, %v754
    %v763 = vadd.f32 %v747, %v755
    %v764 = vadd.f32 %v748, %v756
    %v765 = vsel %vm134, %v757, -inf
    %766 = vmax.xlane.f32.xlu0 %v765
    %v767 = vpop.xlane.xlu0 %766
    %v768 = vsel %vm134, %v758, -inf
    %769 = vmax.xlane.f32.xlu0 %v768
    %v770 = vpop.xlane.xlu0 %769
    %v771 = vsel %vm134, %v759, -inf
    %772 = vmax.xlane.f32.xlu0 %v771
    %v773 = vpop.xlane.xlu0 %772
    %v774 = vsel %vm134, %v760, -inf
    %775 = vmax.xlane.f32.xlu0 %v774
    %v776 = vpop.xlane.xlu0 %775
    %v777 = vsel %vm134, %v761, -inf
    %778 = vmax.xlane.f32.xlu0 %v777
    %v779 = vpop.xlane.xlu0 %778
    %v780 = vsel %vm134, %v762, -inf
    %781 = vmax.xlane.f32.xlu0 %v780
    %v782 = vpop.xlane.xlu0 %781
    %v783 = vsel %vm134, %v763, -inf
    %784 = vmax.xlane.f32.xlu0 %v783
    %v785 = vpop.xlane.xlu0 %784
    %v786 = vsel %vm134, %v764, -inf
    %787 = vmax.xlane.f32.xlu0 %v786
    %v788 = vpop.xlane.xlu0 %787
    %v789 = vsub.f32 %v757, %v767
    %v790 = vsub.f32 %v758, %v770
    %v791 = vsub.f32 %v759, %v773
    %v792 = vsub.f32 %v760, %v776
    %v793 = vsub.f32 %v761, %v779
    %v794 = vsub.f32 %v762, %v782
    %v795 = vsub.f32 %v763, %v785
    %v796 = vsub.f32 %v764, %v788
    %v797 = vmul.f32 %v789, 1.442695
    %v798 = vpow.pop %v797
    %v799 = vmul.f32 %v790, 1.442695
    %v800 = vpow.pop %v799
    %v801 = vmul.f32 %v791, 1.442695
    %v802 = vpow.pop %v801
    %v803 = vmul.f32 %v792, 1.442695
    %v804 = vpow.pop %v803
    %v805 = vmul.f32 %v793, 1.442695
    %v806 = vpow.pop %v805
    %v807 = vmul.f32 %v794, 1.442695
    %v808 = vpow.pop %v807
    %v809 = vmul.f32 %v795, 1.442695
    %v810 = vpow.pop %v809
    %v811 = vmul.f32 %v796, 1.442695
    %v812 = vpow.pop %v811
    %v813 = vsel %vm134, %v798, 0.0
    %814 = vadd.xlane.f32.xlu0 %v813
    %v815 = vpop.xlane.xlu0 %814
    %v816 = vsel %vm134, %v800, 0.0
    %817 = vadd.xlane.f32.xlu0 %v816
    %v818 = vpop.xlane.xlu0 %817
    %v819 = vsel %vm134, %v802, 0.0
    %820 = vadd.xlane.f32.xlu0 %v819
    %v821 = vpop.xlane.xlu0 %820
    %v822 = vsel %vm134, %v804, 0.0
    %823 = vadd.xlane.f32.xlu0 %v822
    %v824 = vpop.xlane.xlu0 %823
    %v825 = vsel %vm134, %v806, 0.0
    %826 = vadd.xlane.f32.xlu0 %v825
    %v827 = vpop.xlane.xlu0 %826
    %v828 = vsel %vm134, %v808, 0.0
    %829 = vadd.xlane.f32.xlu0 %v828
    %v830 = vpop.xlane.xlu0 %829
    %v831 = vsel %vm134, %v810, 0.0
    %832 = vadd.xlane.f32.xlu0 %v831
    %v833 = vpop.xlane.xlu0 %832
    %v834 = vsel %vm134, %v812, 0.0
    %835 = vadd.xlane.f32.xlu0 %v834
    %v836 = vpop.xlane.xlu0 %835
    %v837 = vrcp.pop %v815
    %v838 = vrcp.pop %v818
    %v839 = vrcp.pop %v821
    %v840 = vrcp.pop %v824
    %v841 = vrcp.pop %v827
    %v842 = vrcp.pop %v830
    %v843 = vrcp.pop %v833
    %v844 = vrcp.pop %v836
    %v845 = vmul.f32 %v798, %v837
    %v846 = vmul.f32 %v800, %v838
    %v847 = vmul.f32 %v802, %v839
    %v848 = vmul.f32 %v804, %v840
    %v849 = vmul.f32 %v806, %v841
    %v850 = vmul.f32 %v808, %v842
    %v851 = vmul.f32 %v810, %v843
    %v852 = vmul.f32 %v812, %v844
    %853 = vrot.lane.b32.xlu0 %v110, 64
    %v854 = vpop.permute.xlu0 %853
    %v857 = vsel %vm134, %v845, 0
    %859 = vmatprep.subr.mxu0 0.0
    %860 = vmatpush1.msra.mxu0 0.0
    %861 = vmatprep.subr.mxu0 0.0
    %862 = vmatpush1.msra.mxu0 0.0
    %863 = vmatprep.subr.mxu0 0.0
    %864 = vmatpush1.msra.mxu0 0.0
    %865 = vmatprep.subr.mxu0 0.0
    %866 = vmatpush1.msra.mxu0 0.0
    %867 = vmatprep.subr.mxu0 0.0
    %868 = vmatpush1.msra.mxu0 0.0
    %869 = vmatprep.subr.mxu0 0.0
    %870 = vmatpush1.msra.mxu0 0.0
    %871 = vmatprep.subr.mxu0 0.0
    %872 = vmatpush1.msra.mxu0 0.0
    %873 = vmatprep.subr.mxu0 0.0
    %874 = vmatpush1.msra.mxu0 0.0
    %875 = vmatprep.subr.mxu0 0.0
    %876 = vmatpush1.msra.mxu0 0.0
    %877 = vmatprep.subr.mxu0 0.0
    %878 = vmatpush1.msra.mxu0 0.0
    %879 = vmatprep.subr.mxu0 0.0
    %880 = vmatpush1.msra.mxu0 0.0
    %881 = vmatprep.subr.mxu0 0.0
    %882 = vmatpush1.msra.mxu0 0.0
    %883 = vmatprep.subr.mxu0 0.0
    %884 = vmatpush1.msra.mxu0 0.0
    %885 = vmatprep.subr.mxu0 0.0
    %886 = vmatpush1.msra.mxu0 0.0
    %887 = vmatprep.subr.mxu0 0.0
    %888 = vmatpush1.msra.mxu0 0.0
    %889 = vmatprep.subr.mxu0 0.0
    %890 = vmatpush1.msra.mxu0 %v854
    %891 = vmatprep.subr.mxu0 0.0
    %892 = vmatpush2.msra.mxu0 0.0
    %893 = vmatprep.subr.mxu0 0.0
    %894 = vmatpush2.msra.mxu0 0.0
    %895 = vmatprep.subr.mxu0 0.0
    %896 = vmatpush2.msra.mxu0 0.0
    %897 = vmatprep.subr.mxu0 0.0
    %898 = vmatpush2.msra.mxu0 0.0
    %899 = vmatprep.subr.mxu0 0.0
    %900 = vmatpush2.msra.mxu0 0.0
    %901 = vmatprep.subr.mxu0 0.0
    %902 = vmatpush2.msra.mxu0 0.0
    %903 = vmatprep.subr.mxu0 0.0
    %904 = vmatpush2.msra.mxu0 0.0
    %905 = vmatprep.subr.mxu0 0.0
    %906 = vmatpush2.msra.mxu0 0.0
    %907 = vmatprep.subr.mxu0 0.0
    %908 = vmatpush2.msra.mxu0 0.0
    %909 = vmatprep.subr.mxu0 0.0
    %910 = vmatpush2.msra.mxu0 0.0
    %911 = vmatprep.subr.mxu0 0.0
    %912 = vmatpush2.msra.mxu0 0.0
    %913 = vmatprep.subr.mxu0 0.0
    %914 = vmatpush2.msra.mxu0 0.0
    %915 = vmatprep.subr.mxu0 0.0
    %916 = vmatpush2.msra.mxu0 0.0
    %917 = vmatprep.subr.mxu0 0.0
    %918 = vmatpush2.msra.mxu0 0.0
    %919 = vmatprep.subr.mxu0 0.0
    %920 = vmatpush2.msra.mxu0 0.0
    %921 = vmatprep.subr.mxu0 0.0
    %922 = vmatpush2.msra.mxu0 0.0
    %923 = vmatprep.mubr.f32.mxu0 0.0
    %924 = vmatmul.mubr.f32.gmra.mxu0 %v857
    %v925 = vpop.f32.mrf.mxu0
    %v926 = vadd.f32 0.0, %v925
    %v927 = vpop.f32.mrf.mxu0
    %928 = vdwg.mxu0
    %929 = vrot.lane.b32.xlu0 %v121, 64
    %v930 = vpop.permute.xlu0 %929
    %v933 = vsel %vm134, %v846, 0
    %935 = vmatprep.subr.mxu0 0.0
    %936 = vmatpush1.msra.mxu0 0.0
    %937 = vmatprep.subr.mxu0 0.0
    %938 = vmatpush1.msra.mxu0 0.0
    %939 = vmatprep.subr.mxu0 0.0
    %940 = vmatpush1.msra.mxu0 0.0
    %941 = vmatprep.subr.mxu0 0.0
    %942 = vmatpush1.msra.mxu0 0.0
    %943 = vmatprep.subr.mxu0 0.0
    %944 = vmatpush1.msra.mxu0 0.0
    %945 = vmatprep.subr.mxu0 0.0
    %946 = vmatpush1.msra.mxu0 0.0
    %947 = vmatprep.subr.mxu0 0.0
    %948 = vmatpush1.msra.mxu0 0.0
    %949 = vmatprep.subr.mxu0 0.0
    %950 = vmatpush1.msra.mxu0 0.0
    %951 = vmatprep.subr.mxu0 0.0
    %952 = vmatpush1.msra.mxu0 0.0
    %953 = vmatprep.subr.mxu0 0.0
    %954 = vmatpush1.msra.mxu0 0.0
    %955 = vmatprep.subr.mxu0 0.0
    %956 = vmatpush1.msra.mxu0 0.0
    %957 = vmatprep.subr.mxu0 0.0
    %958 = vmatpush1.msra.mxu0 0.0
    %959 = vmatprep.subr.mxu0 0.0
    %960 = vmatpush1.msra.mxu0 0.0
    %961 = vmatprep.subr.mxu0 0.0
    %962 = vmatpush1.msra.mxu0 0.0
    %963 = vmatprep.subr.mxu0 0.0
    %964 = vmatpush1.msra.mxu0 0.0
    %965 = vmatprep.subr.mxu0 0.0
    %966 = vmatpush1.msra.mxu0 %v930
    %967 = vmatprep.subr.mxu0 0.0
    %968 = vmatpush2.msra.mxu0 0.0
    %969 = vmatprep.subr.mxu0 0.0
    %970 = vmatpush2.msra.mxu0 0.0
    %971 = vmatprep.subr.mxu0 0.0
    %972 = vmatpush2.msra.mxu0 0.0
    %973 = vmatprep.subr.mxu0 0.0
    %974 = vmatpush2.msra.mxu0 0.0
    %975 = vmatprep.subr.mxu0 0.0
    %976 = vmatpush2.msra.mxu0 0.0
    %977 = vmatprep.subr.mxu0 0.0
    %978 = vmatpush2.msra.mxu0 0.0
    %979 = vmatprep.subr.mxu0 0.0
    %980 = vmatpush2.msra.mxu0 0.0
    %981 = vmatprep.subr.mxu0 0.0
    %982 = vmatpush2.msra.mxu0 0.0
    %983 = vmatprep.subr.mxu0 0.0
    %984 = vmatpush2.msra.mxu0 0.0
    %985 = vmatprep.subr.mxu0 0.0
    %986 = vmatpush2.msra.mxu0 0.0
    %987 = vmatprep.subr.mxu0 0.0
    %988 = vmatpush2.msra.mxu0 0.0
    %989 = vmatprep.subr.mxu0 0.0
    %990 = vmatpush2.msra.mxu0 0.0
    %991 = vmatprep.subr.mxu0 0.0
    %992 = vmatpush2.msra.mxu0 0.0
    %993 = vmatprep.subr.mxu0 0.0
    %994 = vmatpush2.msra.mxu0 0.0
    %995 = vmatprep.subr.mxu0 0.0
    %996 = vmatpush2.msra.mxu0 0.0
    %997 = vmatprep.subr.mxu0 0.0
    %998 = vmatpush2.msra.mxu0 0.0
    %999 = vmatprep.mubr.f32.mxu0 0.0
    %1000 = vmatmul.mubr.f32.gmra.mxu0 %v933
    %v1001 = vpop.f32.mrf.mxu0
    %v1002 = vadd.f32 0.0, %v1001
    %v1003 = vpop.f32.mrf.mxu0
    %1004 = vdwg.mxu0
    %1005 = vrot.lane.b32.xlu0 %v125, 64
    %v1006 = vpop.permute.xlu0 %1005
    %v1009 = vsel %vm134, %v847, 0
    %1011 = vmatprep.subr.mxu0 0.0
    %1012 = vmatpush1.msra.mxu0 0.0
    %1013 = vmatprep.subr.mxu0 0.0
    %1014 = vmatpush1.msra.mxu0 0.0
    %1015 = vmatprep.subr.mxu0 0.0
    %1016 = vmatpush1.msra.mxu0 0.0
    %1017 = vmatprep.subr.mxu0 0.0
    %1018 = vmatpush1.msra.mxu0 0.0
    %1019 = vmatprep.subr.mxu0 0.0
    %1020 = vmatpush1.msra.mxu0 0.0
    %1021 = vmatprep.subr.mxu0 0.0
    %1022 = vmatpush1.msra.mxu0 0.0
    %1023 = vmatprep.subr.mxu0 0.0
    %1024 = vmatpush1.msra.mxu0 0.0
    %1025 = vmatprep.subr.mxu0 0.0
    %1026 = vmatpush1.msra.mxu0 0.0
    %1027 = vmatprep.subr.mxu0 0.0
    %1028 = vmatpush1.msra.mxu0 0.0
    %1029 = vmatprep.subr.mxu0 0.0
    %1030 = vmatpush1.msra.mxu0 0.0
    %1031 = vmatprep.subr.mxu0 0.0
    %1032 = vmatpush1.msra.mxu0 0.0
    %1033 = vmatprep.subr.mxu0 0.0
    %1034 = vmatpush1.msra.mxu0 0.0
    %1035 = vmatprep.subr.mxu0 0.0
    %1036 = vmatpush1.msra.mxu0 0.0
    %1037 = vmatprep.subr.mxu0 0.0
    %1038 = vmatpush1.msra.mxu0 0.0
    %1039 = vmatprep.subr.mxu0 0.0
    %1040 = vmatpush1.msra.mxu0 0.0
    %1041 = vmatprep.subr.mxu0 0.0
    %1042 = vmatpush1.msra.mxu0 %v1006
    %1043 = vmatprep.subr.mxu0 0.0
    %1044 = vmatpush2.msra.mxu0 0.0
    %1045 = vmatprep.subr.mxu0 0.0
    %1046 = vmatpush2.msra.mxu0 0.0
    %1047 = vmatprep.subr.mxu0 0.0
    %1048 = vmatpush2.msra.mxu0 0.0
    %1049 = vmatprep.subr.mxu0 0.0
    %1050 = vmatpush2.msra.mxu0 0.0
    %1051 = vmatprep.subr.mxu0 0.0
    %1052 = vmatpush2.msra.mxu0 0.0
    %1053 = vmatprep.subr.mxu0 0.0
    %1054 = vmatpush2.msra.mxu0 0.0
    %1055 = vmatprep.subr.mxu0 0.0
    %1056 = vmatpush2.msra.mxu0 0.0
    %1057 = vmatprep.subr.mxu0 0.0
    %1058 = vmatpush2.msra.mxu0 0.0
    %1059 = vmatprep.subr.mxu0 0.0
    %1060 = vmatpush2.msra.mxu0 0.0
    %1061 = vmatprep.subr.mxu0 0.0
    %1062 = vmatpush2.msra.mxu0 0.0
    %1063 = vmatprep.subr.mxu0 0.0
    %1064 = vmatpush2.msra.mxu0 0.0
    %1065 = vmatprep.subr.mxu0 0.0
    %1066 = vmatpush2.msra.mxu0 0.0
    %1067 = vmatprep.subr.mxu0 0.0
    %1068 = vmatpush2.msra.mxu0 0.0
    %1069 = vmatprep.subr.mxu0 0.0
    %1070 = vmatpush2.msra.mxu0 0.0
    %1071 = vmatprep.subr.mxu0 0.0
    %1072 = vmatpush2.msra.mxu0 0.0
    %1073 = vmatprep.subr.mxu0 0.0
    %1074 = vmatpush2.msra.mxu0 0.0
    %1075 = vmatprep.mubr.f32.mxu0 0.0
    %1076 = vmatmul.mubr.f32.gmra.mxu0 %v1009
    %v1077 = vpop.f32.mrf.mxu0
    %v1078 = vadd.f32 0.0, %v1077
    %v1079 = vpop.f32.mrf.mxu0
    %1080 = vdwg.mxu0
    %1081 = vrot.lane.b32.xlu0 %v129, 64
    %v1082 = vpop.permute.xlu0 %1081
    %v1085 = vsel %vm134, %v848, 0
    %1087 = vmatprep.subr.mxu0 0.0
    %1088 = vmatpush1.msra.mxu0 0.0
    %1089 = vmatprep.subr.mxu0 0.0
    %1090 = vmatpush1.msra.mxu0 0.0
    %1091 = vmatprep.subr.mxu0 0.0
    %1092 = vmatpush1.msra.mxu0 0.0
    %1093 = vmatprep.subr.mxu0 0.0
    %1094 = vmatpush1.msra.mxu0 0.0
    %1095 = vmatprep.subr.mxu0 0.0
    %1096 = vmatpush1.msra.mxu0 0.0
    %1097 = vmatprep.subr.mxu0 0.0
    %1098 = vmatpush1.msra.mxu0 0.0
    %1099 = vmatprep.subr.mxu0 0.0
    %1100 = vmatpush1.msra.mxu0 0.0
    %1101 = vmatprep.subr.mxu0 0.0
    %1102 = vmatpush1.msra.mxu0 0.0
    %1103 = vmatprep.subr.mxu0 0.0
    %1104 = vmatpush1.msra.mxu0 0.0
    %1105 = vmatprep.subr.mxu0 0.0
    %1106 = vmatpush1.msra.mxu0 0.0
    %1107 = vmatprep.subr.mxu0 0.0
    %1108 = vmatpush1.msra.mxu0 0.0
    %1109 = vmatprep.subr.mxu0 0.0
    %1110 = vmatpush1.msra.mxu0 0.0
    %1111 = vmatprep.subr.mxu0 0.0
    %1112 = vmatpush1.msra.mxu0 0.0
    %1113 = vmatprep.subr.mxu0 0.0
    %1114 = vmatpush1.msra.mxu0 0.0
    %1115 = vmatprep.subr.mxu0 0.0
    %1116 = vmatpush1.msra.mxu0 0.0
    %1117 = vmatprep.subr.mxu0 0.0
    %1118 = vmatpush1.msra.mxu0 %v1082
    %1119 = vmatprep.subr.mxu0 0.0
    %1120 = vmatpush2.msra.mxu0 0.0
    %1121 = vmatprep.subr.mxu0 0.0
    %1122 = vmatpush2.msra.mxu0 0.0
    %1123 = vmatprep.subr.mxu0 0.0
    %1124 = vmatpush2.msra.mxu0 0.0
    %1125 = vmatprep.subr.mxu0 0.0
    %1126 = vmatpush2.msra.mxu0 0.0
    %1127 = vmatprep.subr.mxu0 0.0
    %1128 = vmatpush2.msra.mxu0 0.0
    %1129 = vmatprep.subr.mxu0 0.0
    %1130 = vmatpush2.msra.mxu0 0.0
    %1131 = vmatprep.subr.mxu0 0.0
    %1132 = vmatpush2.msra.mxu0 0.0
    %1133 = vmatprep.subr.mxu0 0.0
    %1134 = vmatpush2.msra.mxu0 0.0
    %1135 = vmatprep.subr.mxu0 0.0
    %1136 = vmatpush2.msra.mxu0 0.0
    %1137 = vmatprep.subr.mxu0 0.0
    %1138 = vmatpush2.msra.mxu0 0.0
    %1139 = vmatprep.subr.mxu0 0.0
    %1140 = vmatpush2.msra.mxu0 0.0
    %1141 = vmatprep.subr.mxu0 0.0
    %1142 = vmatpush2.msra.mxu0 0.0
    %1143 = vmatprep.subr.mxu0 0.0
    %1144 = vmatpush2.msra.mxu0 0.0
    %1145 = vmatprep.subr.mxu0 0.0
    %1146 = vmatpush2.msra.mxu0 0.0
    %1147 = vmatprep.subr.mxu0 0.0
    %1148 = vmatpush2.msra.mxu0 0.0
    %1149 = vmatprep.subr.mxu0 0.0
    %1150 = vmatpush2.msra.mxu0 0.0
    %1151 = vmatprep.mubr.f32.mxu0 0.0
    %1152 = vmatmul.mubr.f32.gmra.mxu0 %v1085
    %v1153 = vpop.f32.mrf.mxu0
    %v1154 = vadd.f32 0.0, %v1153
    %v1155 = vpop.f32.mrf.mxu0
    %1156 = vdwg.mxu0
    %1157 = vrot.lane.b32.xlu0 %v115, 64
    %v1158 = vpop.permute.xlu0 %1157
    %v1161 = vsel %vm134, %v849, 0
    %1163 = vmatprep.subr.mxu0 0.0
    %1164 = vmatpush1.msra.mxu0 0.0
    %1165 = vmatprep.subr.mxu0 0.0
    %1166 = vmatpush1.msra.mxu0 0.0
    %1167 = vmatprep.subr.mxu0 0.0
    %1168 = vmatpush1.msra.mxu0 0.0
    %1169 = vmatprep.subr.mxu0 0.0
    %1170 = vmatpush1.msra.mxu0 0.0
    %1171 = vmatprep.subr.mxu0 0.0
    %1172 = vmatpush1.msra.mxu0 0.0
    %1173 = vmatprep.subr.mxu0 0.0
    %1174 = vmatpush1.msra.mxu0 0.0
    %1175 = vmatprep.subr.mxu0 0.0
    %1176 = vmatpush1.msra.mxu0 0.0
    %1177 = vmatprep.subr.mxu0 0.0
    %1178 = vmatpush1.msra.mxu0 0.0
    %1179 = vmatprep.subr.mxu0 0.0
    %1180 = vmatpush1.msra.mxu0 0.0
    %1181 = vmatprep.subr.mxu0 0.0
    %1182 = vmatpush1.msra.mxu0 0.0
    %1183 = vmatprep.subr.mxu0 0.0
    %1184 = vmatpush1.msra.mxu0 0.0
    %1185 = vmatprep.subr.mxu0 0.0
    %1186 = vmatpush1.msra.mxu0 0.0
    %1187 = vmatprep.subr.mxu0 0.0
    %1188 = vmatpush1.msra.mxu0 0.0
    %1189 = vmatprep.subr.mxu0 0.0
    %1190 = vmatpush1.msra.mxu0 0.0
    %1191 = vmatprep.subr.mxu0 0.0
    %1192 = vmatpush1.msra.mxu0 0.0
    %1193 = vmatprep.subr.mxu0 0.0
    %1194 = vmatpush1.msra.mxu0 %v1158
    %1195 = vmatprep.subr.mxu0 0.0
    %1196 = vmatpush2.msra.mxu0 0.0
    %1197 = vmatprep.subr.mxu0 0.0
    %1198 = vmatpush2.msra.mxu0 0.0
    %1199 = vmatprep.subr.mxu0 0.0
    %1200 = vmatpush2.msra.mxu0 0.0
    %1201 = vmatprep.subr.mxu0 0.0
    %1202 = vmatpush2.msra.mxu0 0.0
    %1203 = vmatprep.subr.mxu0 0.0
    %1204 = vmatpush2.msra.mxu0 0.0
    %1205 = vmatprep.subr.mxu0 0.0
    %1206 = vmatpush2.msra.mxu0 0.0
    %1207 = vmatprep.subr.mxu0 0.0
    %1208 = vmatpush2.msra.mxu0 0.0
    %1209 = vmatprep.subr.mxu0 0.0
    %1210 = vmatpush2.msra.mxu0 0.0
    %1211 = vmatprep.subr.mxu0 0.0
    %1212 = vmatpush2.msra.mxu0 0.0
    %1213 = vmatprep.subr.mxu0 0.0
    %1214 = vmatpush2.msra.mxu0 0.0
    %1215 = vmatprep.subr.mxu0 0.0
    %1216 = vmatpush2.msra.mxu0 0.0
    %1217 = vmatprep.subr.mxu0 0.0
    %1218 = vmatpush2.msra.mxu0 0.0
    %1219 = vmatprep.subr.mxu0 0.0
    %1220 = vmatpush2.msra.mxu0 0.0
    %1221 = vmatprep.subr.mxu0 0.0
    %1222 = vmatpush2.msra.mxu0 0.0
    %1223 = vmatprep.subr.mxu0 0.0
    %1224 = vmatpush2.msra.mxu0 0.0
    %1225 = vmatprep.subr.mxu0 0.0
    %1226 = vmatpush2.msra.mxu0 0.0
    %1227 = vmatprep.mubr.f32.mxu0 0.0
    %1228 = vmatmul.mubr.f32.gmra.mxu0 %v1161
    %v1229 = vpop.f32.mrf.mxu0
    %v1230 = vadd.f32 0.0, %v1229
    %v1231 = vpop.f32.mrf.mxu0
    %1232 = vdwg.mxu0
    %1233 = vrot.lane.b32.xlu0 %v123, 64
    %v1234 = vpop.permute.xlu0 %1233
    %v1237 = vsel %vm134, %v850, 0
    %1239 = vmatprep.subr.mxu0 0.0
    %1240 = vmatpush1.msra.mxu0 0.0
    %1241 = vmatprep.subr.mxu0 0.0
    %1242 = vmatpush1.msra.mxu0 0.0
    %1243 = vmatprep.subr.mxu0 0.0
    %1244 = vmatpush1.msra.mxu0 0.0
    %1245 = vmatprep.subr.mxu0 0.0
    %1246 = vmatpush1.msra.mxu0 0.0
    %1247 = vmatprep.subr.mxu0 0.0
    %1248 = vmatpush1.msra.mxu0 0.0
    %1249 = vmatprep.subr.mxu0 0.0
    %1250 = vmatpush1.msra.mxu0 0.0
    %1251 = vmatprep.subr.mxu0 0.0
    %1252 = vmatpush1.msra.mxu0 0.0
    %1253 = vmatprep.subr.mxu0 0.0
    %1254 = vmatpush1.msra.mxu0 0.0
    %1255 = vmatprep.subr.mxu0 0.0
    %1256 = vmatpush1.msra.mxu0 0.0
    %1257 = vmatprep.subr.mxu0 0.0
    %1258 = vmatpush1.msra.mxu0 0.0
    %1259 = vmatprep.subr.mxu0 0.0
    %1260 = vmatpush1.msra.mxu0 0.0
    %1261 = vmatprep.subr.mxu0 0.0
    %1262 = vmatpush1.msra.mxu0 0.0
    %1263 = vmatprep.subr.mxu0 0.0
    %1264 = vmatpush1.msra.mxu0 0.0
    %1265 = vmatprep.subr.mxu0 0.0
    %1266 = vmatpush1.msra.mxu0 0.0
    %1267 = vmatprep.subr.mxu0 0.0
    %1268 = vmatpush1.msra.mxu0 0.0
    %1269 = vmatprep.subr.mxu0 0.0
    %1270 = vmatpush1.msra.mxu0 %v1234
    %1271 = vmatprep.subr.mxu0 0.0
    %1272 = vmatpush2.msra.mxu0 0.0
    %1273 = vmatprep.subr.mxu0 0.0
    %1274 = vmatpush2.msra.mxu0 0.0
    %1275 = vmatprep.subr.mxu0 0.0
    %1276 = vmatpush2.msra.mxu0 0.0
    %1277 = vmatprep.subr.mxu0 0.0
    %1278 = vmatpush2.msra.mxu0 0.0
    %1279 = vmatprep.subr.mxu0 0.0
    %1280 = vmatpush2.msra.mxu0 0.0
    %1281 = vmatprep.subr.mxu0 0.0
    %1282 = vmatpush2.msra.mxu0 0.0
    %1283 = vmatprep.subr.mxu0 0.0
    %1284 = vmatpush2.msra.mxu0 0.0
    %1285 = vmatprep.subr.mxu0 0.0
    %1286 = vmatpush2.msra.mxu0 0.0
    %1287 = vmatprep.subr.mxu0 0.0
    %1288 = vmatpush2.msra.mxu0 0.0
    %1289 = vmatprep.subr.mxu0 0.0
    %1290 = vmatpush2.msra.mxu0 0.0
    %1291 = vmatprep.subr.mxu0 0.0
    %1292 = vmatpush2.msra.mxu0 0.0
    %1293 = vmatprep.subr.mxu0 0.0
    %1294 = vmatpush2.msra.mxu0 0.0
    %1295 = vmatprep.subr.mxu0 0.0
    %1296 = vmatpush2.msra.mxu0 0.0
    %1297 = vmatprep.subr.mxu0 0.0
    %1298 = vmatpush2.msra.mxu0 0.0
    %1299 = vmatprep.subr.mxu0 0.0
    %1300 = vmatpush2.msra.mxu0 0.0
    %1301 = vmatprep.subr.mxu0 0.0
    %1302 = vmatpush2.msra.mxu0 0.0
    %1303 = vmatprep.mubr.f32.mxu0 0.0
    %1304 = vmatmul.mubr.f32.gmra.mxu0 %v1237
    %v1305 = vpop.f32.mrf.mxu0
    %v1306 = vadd.f32 0.0, %v1305
    %v1307 = vpop.f32.mrf.mxu0
    %1308 = vdwg.mxu0
    %1309 = vrot.lane.b32.xlu0 %v127, 64
    %v1310 = vpop.permute.xlu0 %1309
    %v1313 = vsel %vm134, %v851, 0
    %1315 = vmatprep.subr.mxu0 0.0
    %1316 = vmatpush1.msra.mxu0 0.0
    %1317 = vmatprep.subr.mxu0 0.0
    %1318 = vmatpush1.msra.mxu0 0.0
    %1319 = vmatprep.subr.mxu0 0.0
    %1320 = vmatpush1.msra.mxu0 0.0
    %1321 = vmatprep.subr.mxu0 0.0
    %1322 = vmatpush1.msra.mxu0 0.0
    %1323 = vmatprep.subr.mxu0 0.0
    %1324 = vmatpush1.msra.mxu0 0.0
    %1325 = vmatprep.subr.mxu0 0.0
    %1326 = vmatpush1.msra.mxu0 0.0
    %1327 = vmatprep.subr.mxu0 0.0
    %1328 = vmatpush1.msra.mxu0 0.0
    %1329 = vmatprep.subr.mxu0 0.0
    %1330 = vmatpush1.msra.mxu0 0.0
    %1331 = vmatprep.subr.mxu0 0.0
    %1332 = vmatpush1.msra.mxu0 0.0
    %1333 = vmatprep.subr.mxu0 0.0
    %1334 = vmatpush1.msra.mxu0 0.0
    %1335 = vmatprep.subr.mxu0 0.0
    %1336 = vmatpush1.msra.mxu0 0.0
    %1337 = vmatprep.subr.mxu0 0.0
    %1338 = vmatpush1.msra.mxu0 0.0
    %1339 = vmatprep.subr.mxu0 0.0
    %1340 = vmatpush1.msra.mxu0 0.0
    %1341 = vmatprep.subr.mxu0 0.0
    %1342 = vmatpush1.msra.mxu0 0.0
    %1343 = vmatprep.subr.mxu0 0.0
    %1344 = vmatpush1.msra.mxu0 0.0
    %1345 = vmatprep.subr.mxu0 0.0
    %1346 = vmatpush1.msra.mxu0 %v1310
    %1347 = vmatprep.subr.mxu0 0.0
    %1348 = vmatpush2.msra.mxu0 0.0
    %1349 = vmatprep.subr.mxu0 0.0
    %1350 = vmatpush2.msra.mxu0 0.0
    %1351 = vmatprep.subr.mxu0 0.0
    %1352 = vmatpush2.msra.mxu0 0.0
    %1353 = vmatprep.subr.mxu0 0.0
    %1354 = vmatpush2.msra.mxu0 0.0
    %1355 = vmatprep.subr.mxu0 0.0
    %1356 = vmatpush2.msra.mxu0 0.0
    %1357 = vmatprep.subr.mxu0 0.0
    %1358 = vmatpush2.msra.mxu0 0.0
    %1359 = vmatprep.subr.mxu0 0.0
    %1360 = vmatpush2.msra.mxu0 0.0
    %1361 = vmatprep.subr.mxu0 0.0
    %1362 = vmatpush2.msra.mxu0 0.0
    %1363 = vmatprep.subr.mxu0 0.0
    %1364 = vmatpush2.msra.mxu0 0.0
    %1365 = vmatprep.subr.mxu0 0.0
    %1366 = vmatpush2.msra.mxu0 0.0
    %1367 = vmatprep.subr.mxu0 0.0
    %1368 = vmatpush2.msra.mxu0 0.0
    %1369 = vmatprep.subr.mxu0 0.0
    %1370 = vmatpush2.msra.mxu0 0.0
    %1371 = vmatprep.subr.mxu0 0.0
    %1372 = vmatpush2.msra.mxu0 0.0
    %1373 = vmatprep.subr.mxu0 0.0
    %1374 = vmatpush2.msra.mxu0 0.0
    %1375 = vmatprep.subr.mxu0 0.0
    %1376 = vmatpush2.msra.mxu0 0.0
    %1377 = vmatprep.subr.mxu0 0.0
    %1378 = vmatpush2.msra.mxu0 0.0
    %1379 = vmatprep.mubr.f32.mxu0 0.0
    %1380 = vmatmul.mubr.f32.gmra.mxu0 %v1313
    %v1381 = vpop.f32.mrf.mxu0
    %v1382 = vadd.f32 0.0, %v1381
    %v1383 = vpop.f32.mrf.mxu0
    %1384 = vdwg.mxu0
    %1385 = vrot.lane.b32.xlu0 %v131, 64
    %v1386 = vpop.permute.xlu0 %1385
    %v1389 = vsel %vm134, %v852, 0
    %1391 = vmatprep.subr.mxu0 0.0
    %1392 = vmatpush1.msra.mxu0 0.0
    %1393 = vmatprep.subr.mxu0 0.0
    %1394 = vmatpush1.msra.mxu0 0.0
    %1395 = vmatprep.subr.mxu0 0.0
    %1396 = vmatpush1.msra.mxu0 0.0
    %1397 = vmatprep.subr.mxu0 0.0
    %1398 = vmatpush1.msra.mxu0 0.0
    %1399 = vmatprep.subr.mxu0 0.0
    %1400 = vmatpush1.msra.mxu0 0.0
    %1401 = vmatprep.subr.mxu0 0.0
    %1402 = vmatpush1.msra.mxu0 0.0
    %1403 = vmatprep.subr.mxu0 0.0
    %1404 = vmatpush1.msra.mxu0 0.0
    %1405 = vmatprep.subr.mxu0 0.0
    %1406 = vmatpush1.msra.mxu0 0.0
    %1407 = vmatprep.subr.mxu0 0.0
    %1408 = vmatpush1.msra.mxu0 0.0
    %1409 = vmatprep.subr.mxu0 0.0
    %1410 = vmatpush1.msra.mxu0 0.0
    %1411 = vmatprep.subr.mxu0 0.0
    %1412 = vmatpush1.msra.mxu0 0.0
    %1413 = vmatprep.subr.mxu0 0.0
    %1414 = vmatpush1.msra.mxu0 0.0
    %1415 = vmatprep.subr.mxu0 0.0
    %1416 = vmatpush1.msra.mxu0 0.0
    %1417 = vmatprep.subr.mxu0 0.0
    %1418 = vmatpush1.msra.mxu0 0.0
    %1419 = vmatprep.subr.mxu0 0.0
    %1420 = vmatpush1.msra.mxu0 0.0
    %1421 = vmatprep.subr.mxu0 0.0
    %1422 = vmatpush1.msra.mxu0 %v1386
    %1423 = vmatprep.subr.mxu0 0.0
    %1424 = vmatpush2.msra.mxu0 0.0
    %1425 = vmatprep.subr.mxu0 0.0
    %1426 = vmatpush2.msra.mxu0 0.0
    %1427 = vmatprep.subr.mxu0 0.0
    %1428 = vmatpush2.msra.mxu0 0.0
    %1429 = vmatprep.subr.mxu0 0.0
    %1430 = vmatpush2.msra.mxu0 0.0
    %1431 = vmatprep.subr.mxu0 0.0
    %1432 = vmatpush2.msra.mxu0 0.0
    %1433 = vmatprep.subr.mxu0 0.0
    %1434 = vmatpush2.msra.mxu0 0.0
    %1435 = vmatprep.subr.mxu0 0.0
    %1436 = vmatpush2.msra.mxu0 0.0
    %1437 = vmatprep.subr.mxu0 0.0
    %1438 = vmatpush2.msra.mxu0 0.0
    %1439 = vmatprep.subr.mxu0 0.0
    %1440 = vmatpush2.msra.mxu0 0.0
    %1441 = vmatprep.subr.mxu0 0.0
    %1442 = vmatpush2.msra.mxu0 0.0
    %1443 = vmatprep.subr.mxu0 0.0
    %1444 = vmatpush2.msra.mxu0 0.0
    %1445 = vmatprep.subr.mxu0 0.0
    %1446 = vmatpush2.msra.mxu0 0.0
    %1447 = vmatprep.subr.mxu0 0.0
    %1448 = vmatpush2.msra.mxu0 0.0
    %1449 = vmatprep.subr.mxu0 0.0
    %1450 = vmatpush2.msra.mxu0 0.0
    %1451 = vmatprep.subr.mxu0 0.0
    %1452 = vmatpush2.msra.mxu0 0.0
    %1453 = vmatprep.subr.mxu0 0.0
    %1454 = vmatpush2.msra.mxu0 0.0
    %1455 = vmatprep.mubr.f32.mxu0 0.0
    %1456 = vmatmul.mubr.f32.gmra.mxu0 %v1389
    %v1457 = vpop.f32.mrf.mxu0
    %v1458 = vadd.f32 0.0, %v1457
    %v1459 = vpop.f32.mrf.mxu0
    %1460 = vdwg.mxu0
    %1463 = vrot.lane.b32.xlu0 %v1002, 8
    %v1464 = vpop.permute.xlu0 %1463
    %1465 = vrot.lane.b32.xlu0 %v1306, 8
    %v1466 = vpop.permute.xlu0 %1465
    %1471 = vrot.lane.b32.xlu0 %v1078, 16
    %v1472 = vpop.permute.xlu0 %1471
    %1473 = vrot.lane.b32.xlu0 %v1382, 16
    %v1474 = vpop.permute.xlu0 %1473
    %1479 = vrot.lane.b32.xlu0 %v1154, 24
    %v1480 = vpop.permute.xlu0 %1479
    %1481 = vrot.lane.b32.xlu0 %v1458, 24
    %v1482 = vpop.permute.xlu0 %1481
    %v1485 = vsel %vm134, %v926, %v1464
    %v1486 = vsel %vm134, %v1230, %v1466
    %vm1487 = vcmask 130048
    %v1488 = vsel %vm1487, %v1485, %v1472
    %v1489 = vsel %vm1487, %v1486, %v1474
    %vm1490 = vcmask 195584
    %v1491 = vsel %vm1490, %v1488, %v1480
    %v1492 = vsel %vm1490, %v1489, %v1482
    %v1493 = vlaneseq
    %v1494 = vshrl.u32 %v1493, 7
    %v1495 = vsub.s32 1, %v1494
    %v1496 = vrot.slane %v31, %v1495
    %1501 = vrot.lane.b32.xlu0 %v23, 32
    %v1502 = vpop.permute.xlu0 %1501
    %1503 = vrot.lane.b32.xlu0 %v25, 32
    %v1504 = vpop.permute.xlu0 %1503
    %1505 = vrot.lane.b32.xlu0 %v27, 32
    %v1506 = vpop.permute.xlu0 %1505
    %1507 = vrot.lane.b32.xlu0 %v29, 32
    %v1508 = vpop.permute.xlu0 %1507
    %v1514 = vsel %vm36, %v1491, 0
    %v1517 = vsel %vm36, %v1492, 0
    %1519 = vmatprep.subr.mxu0 0.0
    %1520 = vmatpush1.msra.mxu0 0.0
    %1521 = vmatprep.subr.mxu0 0.0
    %1522 = vmatpush1.msra.mxu0 0.0
    %1523 = vmatprep.subr.mxu0 0.0
    %1524 = vmatpush1.msra.mxu0 0.0
    %1525 = vmatprep.subr.mxu0 0.0
    %1526 = vmatpush1.msra.mxu0 0.0
    %1527 = vmatprep.subr.mxu0 0.0
    %1528 = vmatpush1.msra.mxu0 0.0
    %1529 = vmatprep.subr.mxu0 0.0
    %1530 = vmatpush1.msra.mxu0 0.0
    %1531 = vmatprep.subr.mxu0 0.0
    %1532 = vmatpush1.msra.mxu0 0.0
    %1533 = vmatprep.subr.mxu0 0.0
    %1534 = vmatpush1.msra.mxu0 0.0
    %1535 = vmatprep.subr.mxu0 0.0
    %1536 = vmatpush1.msra.mxu0 0.0
    %1537 = vmatprep.subr.mxu0 0.0
    %1538 = vmatpush1.msra.mxu0 0.0
    %1539 = vmatprep.subr.mxu0 0.0
    %1540 = vmatpush1.msra.mxu0 0.0
    %1541 = vmatprep.subr.mxu0 0.0
    %1542 = vmatpush1.msra.mxu0 0.0
    %1543 = vmatprep.subr.mxu0 0.0
    %1544 = vmatpush1.msra.mxu0 %v1508
    %1545 = vmatprep.subr.mxu0 0.0
    %1546 = vmatpush1.msra.mxu0 %v1506
    %1547 = vmatprep.subr.mxu0 0.0
    %1548 = vmatpush1.msra.mxu0 %v1504
    %1549 = vmatprep.subr.mxu0 0.0
    %1550 = vmatpush1.msra.mxu0 %v1502
    %1551 = vmatprep.subr.mxu0 0.0
    %1552 = vmatpush2.msra.mxu0 0.0
    %1553 = vmatprep.subr.mxu0 0.0
    %1554 = vmatpush2.msra.mxu0 0.0
    %1555 = vmatprep.subr.mxu0 0.0
    %1556 = vmatpush2.msra.mxu0 0.0
    %1557 = vmatprep.subr.mxu0 0.0
    %1558 = vmatpush2.msra.mxu0 0.0
    %1559 = vmatprep.subr.mxu0 0.0
    %1560 = vmatpush2.msra.mxu0 0.0
    %1561 = vmatprep.subr.mxu0 0.0
    %1562 = vmatpush2.msra.mxu0 0.0
    %1563 = vmatprep.subr.mxu0 0.0
    %1564 = vmatpush2.msra.mxu0 0.0
    %1565 = vmatprep.subr.mxu0 0.0
    %1566 = vmatpush2.msra.mxu0 0.0
    %1567 = vmatprep.subr.mxu0 0.0
    %1568 = vmatpush2.msra.mxu0 0.0
    %1569 = vmatprep.subr.mxu0 0.0
    %1570 = vmatpush2.msra.mxu0 0.0
    %1571 = vmatprep.subr.mxu0 0.0
    %1572 = vmatpush2.msra.mxu0 0.0
    %1573 = vmatprep.subr.mxu0 0.0
    %1574 = vmatpush2.msra.mxu0 0.0
    %1575 = vmatprep.subr.mxu0 0.0
    %1576 = vmatpush2.msra.mxu0 0.0
    %1577 = vmatprep.subr.mxu0 0.0
    %1578 = vmatpush2.msra.mxu0 0.0
    %1579 = vmatprep.subr.mxu0 0.0
    %1580 = vmatpush2.msra.mxu0 0.0
    %1581 = vmatprep.subr.mxu0 0.0
    %1582 = vmatpush2.msra.mxu0 0.0
    %1583 = vmatprep.mubr.f32.mxu0 0.0
    %1584 = vmatmul.mubr.f32.gmra.mxu0 %v1514
    %v1585 = vpop.f32.mrf.mxu0
    %v1586 = vadd.f32 %v1496, %v1585
    %v1587 = vpop.f32.mrf.mxu0
    %1588 = vmatprep.mubr.f32.mxu0 0.0
    %1589 = vmatmul.mubr.f32.gmra.mxu0 %v1517
    %v1590 = vpop.f32.mrf.mxu0
    %v1591 = vadd.f32 %v1496, %v1590
    %v1592 = vpop.f32.mrf.mxu0
    %1593 = vdwg.mxu0
    %v1594 = vadd.f32 %v21, %v1586
    %v1595 = vadd.f32 %v22, %v1591
    %v1596 = vsel %vm36, %v1594, 0.0
    %1597 = vadd.xlane.f32.xlu0 %v1596
    %v1598 = vpop.xlane.xlu0 %1597
    %v1599 = vsel %vm36, %v1595, 0.0
    %1600 = vadd.xlane.f32.xlu0 %v1599
    %v1601 = vpop.xlane.xlu0 %1600
    %v1602 = vrcp.pop 32.0
    %v1603 = vmul.f32 %v1598, %v1602
    %v1604 = vmul.f32 %v1601, %v1602
    %v1605 = vsub.f32 %v1594, %v1603
    %v1606 = vsub.f32 %v1595, %v1604
    %v1607 = vmul.f32 %v1605, %v1605
    %v1608 = vmul.f32 %v1606, %v1606
    %v1609 = vsel %vm36, %v1607, 0.0
    %1610 = vadd.xlane.f32.xlu0 %v1609
    %v1611 = vpop.xlane.xlu0 %1610
    %v1612 = vsel %vm36, %v1608, 0.0
    %1613 = vadd.xlane.f32.xlu0 %v1612
    %v1614 = vpop.xlane.xlu0 %1613
    %v1615 = vmul.f32 %v1611, %v1602
    %v1616 = vmul.f32 %v1614, %v1602
    %v1617 = vadd.f32 %v1615, 1e-05
    %v1618 = vadd.f32 %v1616, 1e-05
    %v1619 = vrsqrt.pop %v1617
    %v1620 = vrsqrt.pop %v1618
    %v1621 = vmul.f32 %v1605, %v1619
    %v1622 = vmul.f32 %v1606, %v1620
    %v1623 = vlaneseq
    %v1624 = vshrl.u32 %v1623, 7
    %v1625 = vsub.s32 2, %v1624
    %v1626 = vrot.slane %v31, %v1625
    %v1627 = vmul.f32 %v1621, %v1626
    %v1628 = vmul.f32 %v1622, %v1626
    %v1629 = vlaneseq
    %v1630 = vshrl.u32 %v1629, 7
    %v1631 = vsub.s32 3, %v1630
    %v1632 = vrot.slane %v31, %v1631
    %v1633 = vadd.f32 %v1627, %v1632
    %v1634 = vadd.f32 %v1628, %v1632
    %v1635 = vlaneseq
    %v1636 = vshrl.u32 %v1635, 7
    %v1637 = vsub.s32 4, %v1636
    %v1638 = vrot.slane %v31, %v1637
    %v1640 = vsel %vm36, %v1633, 0
    %v1643 = vsel %vm36, %v1634, 0
    %1645 = vmatprep.subr.mxu0 0.0
    %1646 = vmatpush1.msra.mxu0 0.0
    %1647 = vmatprep.subr.mxu0 0.0
    %1648 = vmatpush1.msra.mxu0 0.0
    %1649 = vmatprep.subr.mxu0 0.0
    %1650 = vmatpush1.msra.mxu0 0.0
    %1651 = vmatprep.subr.mxu0 0.0
    %1652 = vmatpush1.msra.mxu0 0.0
    %1653 = vmatprep.subr.mxu0 0.0
    %1654 = vmatpush1.msra.mxu0 0.0
    %1655 = vmatprep.subr.mxu0 0.0
    %1656 = vmatpush1.msra.mxu0 0.0
    %1657 = vmatprep.subr.mxu0 0.0
    %1658 = vmatpush1.msra.mxu0 0.0
    %1659 = vmatprep.subr.mxu0 0.0
    %1660 = vmatpush1.msra.mxu0 0.0
    %1661 = vmatprep.subr.mxu0 0.0
    %1662 = vmatpush1.msra.mxu0 0.0
    %1663 = vmatprep.subr.mxu0 0.0
    %1664 = vmatpush1.msra.mxu0 0.0
    %1665 = vmatprep.subr.mxu0 0.0
    %1666 = vmatpush1.msra.mxu0 0.0
    %1667 = vmatprep.subr.mxu0 0.0
    %1668 = vmatpush1.msra.mxu0 0.0
    %1669 = vmatprep.subr.mxu0 0.0
    %1670 = vmatpush1.msra.mxu0 %v30
    %1671 = vmatprep.subr.mxu0 0.0
    %1672 = vmatpush1.msra.mxu0 %v28
    %1673 = vmatprep.subr.mxu0 0.0
    %1674 = vmatpush1.msra.mxu0 %v26
    %1675 = vmatprep.subr.mxu0 0.0
    %1676 = vmatpush1.msra.mxu0 %v24
    %1677 = vmatprep.subr.mxu0 0.0
    %1678 = vmatpush2.msra.mxu0 0.0
    %1679 = vmatprep.subr.mxu0 0.0
    %1680 = vmatpush2.msra.mxu0 0.0
    %1681 = vmatprep.subr.mxu0 0.0
    %1682 = vmatpush2.msra.mxu0 0.0
    %1683 = vmatprep.subr.mxu0 0.0
    %1684 = vmatpush2.msra.mxu0 0.0
    %1685 = vmatprep.subr.mxu0 0.0
    %1686 = vmatpush2.msra.mxu0 0.0
    %1687 = vmatprep.subr.mxu0 0.0
    %1688 = vmatpush2.msra.mxu0 0.0
    %1689 = vmatprep.subr.mxu0 0.0
    %1690 = vmatpush2.msra.mxu0 0.0
    %1691 = vmatprep.subr.mxu0 0.0
    %1692 = vmatpush2.msra.mxu0 0.0
    %1693 = vmatprep.subr.mxu0 0.0
    %1694 = vmatpush2.msra.mxu0 0.0
    %1695 = vmatprep.subr.mxu0 0.0
    %1696 = vmatpush2.msra.mxu0 0.0
    %1697 = vmatprep.subr.mxu0 0.0
    %1698 = vmatpush2.msra.mxu0 0.0
    %1699 = vmatprep.subr.mxu0 0.0
    %1700 = vmatpush2.msra.mxu0 0.0
    %1701 = vmatprep.subr.mxu0 0.0
    %1702 = vmatpush2.msra.mxu0 0.0
    %1703 = vmatprep.subr.mxu0 0.0
    %1704 = vmatpush2.msra.mxu0 0.0
    %1705 = vmatprep.subr.mxu0 0.0
    %1706 = vmatpush2.msra.mxu0 0.0
    %1707 = vmatprep.subr.mxu0 0.0
    %1708 = vmatpush2.msra.mxu0 0.0
    %1709 = vmatprep.mubr.f32.mxu0 0.0
    %1710 = vmatmul.mubr.f32.gmra.mxu0 %v1640
    %v1711 = vpop.f32.mrf.mxu0
    %v1712 = vadd.f32 %v1638, %v1711
    %v1713 = vpop.f32.mrf.mxu0
    %1714 = vmatprep.mubr.f32.mxu0 0.0
    %1715 = vmatmul.mubr.f32.gmra.mxu0 %v1643
    %v1716 = vpop.f32.mrf.mxu0
    %v1717 = vadd.f32 %v1638, %v1716
    %v1718 = vpop.f32.mrf.mxu0
    %1719 = vdwg.mxu0
    %v1720 = vmax.f32 %v1712, 0.0
    %v1721 = vmax.f32 %v1717, 0.0
    %v1722 = vld [vmem:[%s3] sm:$0xff]
    %v1723 = vld [vmem:[%s3 + $0x8] sm:$0xff]
    %v1724 = vld [vmem:[%s3 + $0x10] sm:$0xff]
    %v1725 = vld [vmem:[%s3 + $0x18] sm:$0xff]
    %v1726 = vld [vmem:[%s3 + $0x20] sm:$0xff]
    %v1727 = vld [vmem:[%s3 + $0x28] sm:$0xff]
    %v1728 = vld [vmem:[%s3 + $0x30] sm:$0xff]
    %v1729 = vld [vmem:[%s3 + $0x38] sm:$0xff]
    %v1730 = vlaneseq
    %v1731 = vshrl.u32 %v1730, 7
    %v1732 = vsub.s32 5, %v1731
    %v1733 = vrot.slane %v31, %v1732
    %vm1734 = vcmask 523264
    %v1736 = vsel %vm1734, %v1720, 0
    %v1739 = vsel %vm1734, %v1721, 0
    %1741 = vmatprep.subr.mxu0 0.0
    %1742 = vmatpush1.msra.mxu0 0.0
    %1743 = vmatprep.subr.mxu0 0.0
    %1744 = vmatpush1.msra.mxu0 0.0
    %1745 = vmatprep.subr.mxu0 0.0
    %1746 = vmatpush1.msra.mxu0 0.0
    %1747 = vmatprep.subr.mxu0 0.0
    %1748 = vmatpush1.msra.mxu0 0.0
    %1749 = vmatprep.subr.mxu0 0.0
    %1750 = vmatpush1.msra.mxu0 0.0
    %1751 = vmatprep.subr.mxu0 0.0
    %1752 = vmatpush1.msra.mxu0 0.0
    %1753 = vmatprep.subr.mxu0 0.0
    %1754 = vmatpush1.msra.mxu0 0.0
    %1755 = vmatprep.subr.mxu0 0.0
    %1756 = vmatpush1.msra.mxu0 0.0
    %1757 = vmatprep.subr.mxu0 0.0
    %1758 = vmatpush1.msra.mxu0 %v1729
    %1759 = vmatprep.subr.mxu0 0.0
    %1760 = vmatpush1.msra.mxu0 %v1728
    %1761 = vmatprep.subr.mxu0 0.0
    %1762 = vmatpush1.msra.mxu0 %v1727
    %1763 = vmatprep.subr.mxu0 0.0
    %1764 = vmatpush1.msra.mxu0 %v1726
    %1765 = vmatprep.subr.mxu0 0.0
    %1766 = vmatpush1.msra.mxu0 %v1725
    %1767 = vmatprep.subr.mxu0 0.0
    %1768 = vmatpush1.msra.mxu0 %v1724
    %1769 = vmatprep.subr.mxu0 0.0
    %1770 = vmatpush1.msra.mxu0 %v1723
    %1771 = vmatprep.subr.mxu0 0.0
    %1772 = vmatpush1.msra.mxu0 %v1722
    %1773 = vmatprep.subr.mxu0 0.0
    %1774 = vmatpush2.msra.mxu0 0.0
    %1775 = vmatprep.subr.mxu0 0.0
    %1776 = vmatpush2.msra.mxu0 0.0
    %1777 = vmatprep.subr.mxu0 0.0
    %1778 = vmatpush2.msra.mxu0 0.0
    %1779 = vmatprep.subr.mxu0 0.0
    %1780 = vmatpush2.msra.mxu0 0.0
    %1781 = vmatprep.subr.mxu0 0.0
    %1782 = vmatpush2.msra.mxu0 0.0
    %1783 = vmatprep.subr.mxu0 0.0
    %1784 = vmatpush2.msra.mxu0 0.0
    %1785 = vmatprep.subr.mxu0 0.0
    %1786 = vmatpush2.msra.mxu0 0.0
    %1787 = vmatprep.subr.mxu0 0.0
    %1788 = vmatpush2.msra.mxu0 0.0
    %1789 = vmatprep.subr.mxu0 0.0
    %1790 = vmatpush2.msra.mxu0 0.0
    %1791 = vmatprep.subr.mxu0 0.0
    %1792 = vmatpush2.msra.mxu0 0.0
    %1793 = vmatprep.subr.mxu0 0.0
    %1794 = vmatpush2.msra.mxu0 0.0
    %1795 = vmatprep.subr.mxu0 0.0
    %1796 = vmatpush2.msra.mxu0 0.0
    %1797 = vmatprep.subr.mxu0 0.0
    %1798 = vmatpush2.msra.mxu0 0.0
    %1799 = vmatprep.subr.mxu0 0.0
    %1800 = vmatpush2.msra.mxu0 0.0
    %1801 = vmatprep.subr.mxu0 0.0
    %1802 = vmatpush2.msra.mxu0 0.0
    %1803 = vmatprep.subr.mxu0 0.0
    %1804 = vmatpush2.msra.mxu0 0.0
    %1805 = vmatprep.mubr.f32.mxu0 0.0
    %1806 = vmatmul.mubr.f32.gmra.mxu0 %v1736
    %v1807 = vpop.f32.mrf.mxu0
    %v1808 = vadd.f32 %v1733, %v1807
    %v1809 = vpop.f32.mrf.mxu0
    %1810 = vmatprep.mubr.f32.mxu0 0.0
    %1811 = vmatmul.mubr.f32.gmra.mxu0 %v1739
    %v1812 = vpop.f32.mrf.mxu0
    %v1813 = vadd.f32 %v1733, %v1812
    %v1814 = vpop.f32.mrf.mxu0
    %1815 = vdwg.mxu0
    %v1816 = vadd.f32 %v1633, %v1808
    %v1817 = vadd.f32 %v1634, %v1813
    %v1818 = vsel %vm36, %v1816, 0.0
    %1819 = vadd.xlane.f32.xlu0 %v1818
    %v1820 = vpop.xlane.xlu0 %1819
    %v1821 = vsel %vm36, %v1817, 0.0
    %1822 = vadd.xlane.f32.xlu0 %v1821
    %v1823 = vpop.xlane.xlu0 %1822
    %v1824 = vmul.f32 %v1820, %v1602
    %v1825 = vmul.f32 %v1823, %v1602
    %v1826 = vsub.f32 %v1816, %v1824
    %v1827 = vsub.f32 %v1817, %v1825
    %v1828 = vmul.f32 %v1826, %v1826
    %v1829 = vmul.f32 %v1827, %v1827
    %v1830 = vsel %vm36, %v1828, 0.0
    %1831 = vadd.xlane.f32.xlu0 %v1830
    %v1832 = vpop.xlane.xlu0 %1831
    %v1833 = vsel %vm36, %v1829, 0.0
    %1834 = vadd.xlane.f32.xlu0 %v1833
    %v1835 = vpop.xlane.xlu0 %1834
    %v1836 = vmul.f32 %v1832, %v1602
    %v1837 = vmul.f32 %v1835, %v1602
    %v1838 = vadd.f32 %v1836, 1e-05
    %v1839 = vadd.f32 %v1837, 1e-05
    %v1840 = vrsqrt.pop %v1838
    %v1841 = vrsqrt.pop %v1839
    %v1842 = vmul.f32 %v1826, %v1840
    %v1843 = vmul.f32 %v1827, %v1841
    %v1844 = vlaneseq
    %v1845 = vshrl.u32 %v1844, 7
    %v1846 = vsub.s32 6, %v1845
    %v1847 = vrot.slane %v31, %v1846
    %v1848 = vmul.f32 %v1842, %v1847
    %v1849 = vmul.f32 %v1843, %v1847
    %v1850 = vlaneseq
    %v1851 = vshrl.u32 %v1850, 7
    %v1852 = vsub.s32 7, %v1851
    %v1853 = vrot.slane %v31, %v1852
    %v1854 = vadd.f32 %v1848, %v1853
    %v1855 = vadd.f32 %v1849, %v1853
    %1856 = vst.msk [vmem:[#allocation2] sm:$0xff] %vm36, %v1854
    %1857 = vst.msk [vmem:[#allocation2 + $0x8] sm:$0xff] %vm36, %v1855
    // Predicated region
    $region22: #{encoder_layer.1} parent=1 // pred_check
      _
    $region23: #{encoder_layer.1} parent=1 // pred_check_branch
      %1859 = sbr.rel (0) target = $region25
    $region24: #{encoder_layer.1} parent=1 // pred_region
      %s1861 = ssub.s32 256, 256
      %1862 = vsyncadd [#allocation3], %s1861
      %s1863 = sshll.u32 [#allocation2], 4
      %s1864 = int_to_ptr.vmem [resolvable:$true] %s1863
      %1869 = dma.vmem_to_hbm [thread:$0]  %s1864, 256, %s5, [#allocation3], 128, 128, 8
    $region25: #{encoder_layer.1} parent=1 // pred_fallthru
      _
    // Predicated region
    $region26: #{encoder_layer.1} parent=1 // pred_check
      _
    $region27: #{encoder_layer.1} parent=1 // pred_check_branch
      %1871 = sbr.rel (0) target = $region29
    $region28: #{encoder_layer.1} parent=1 // pred_region
      %1872 = dma.done [#allocation3], 256
    $region29: #{encoder_layer.1} parent=1 // pred_fallthru
      _
    %1873 = vsyncpa [#allocation3], 1

</llo_original>
